<compile_context>
chip_gen: v7x
topology: tpu7x:2x2x1
jax: 0.10.0
libtpu: 0.0.40
codegen_flags: <defaults>
</compile_context>

<pallas_src>
import jax
import jax.numpy as jnp
from jax.experimental import pallas as pl
from jax.experimental.pallas import tpu as pltpu

INPUT_DIM = 32
HIDDEN_DIMS = [128, 128, 128, 128]
ATTN_HID = HIDDEN_DIMS[-1] // 2   # 64
FINAL_HID = 64
BN_EPS = 1e-5


def _round_up(n, m):
    return (n + m - 1) // m * m


def _leaky_relu(x, slope=0.1):
    return jnp.where(x > 0, x, slope * x)


def deep_surv_kernel(x_ref, *refs):
    """DeepSurv forward for one (TB, INPUT_DIM) batch tile."""
    o_ref = refs[-1]
    p = refs[:-1]
    idx = 0

    def take(n):
        nonlocal idx
        out = p[idx:idx + n]
        idx += n
        return out

    # ---- feature extractor: 4x (Linear+foldedBN -> LeakyReLU(0.1) -> Dropout[eval: id])
    out_bf = x_ref[...]                     # bf16 (TB, 32)
    out_f32 = None
    for _ in range(len(HIDDEN_DIMS)):
        w, b = take(2)
        h = jnp.dot(out_bf, w[...], preferred_element_type=jnp.float32) + b[...]
        h = _leaky_relu(h, 0.1)
        out_f32 = h
        out_bf = h.astype(jnp.bfloat16)
        # TODO(synk): Dropout has no inference-time effect; training-mode dropout not implemented.

    # ---- residual layers: out = relu(out + Linear(out))
    for _ in range(len(HIDDEN_DIMS)):
        w, b = take(2)
        res = jnp.dot(out_bf, w[...], preferred_element_type=jnp.float32) + b[...]
        out_f32 = jnp.maximum(out_f32 + res, 0.0)
        out_bf = out_f32.astype(jnp.bfloat16)

    # ---- attention gate: Linear -> ReLU -> Linear -> Sigmoid, then elementwise gate
    wa1, ba1, wa2, ba2 = take(4)
    a = jnp.maximum(
        jnp.dot(out_bf, wa1[...], preferred_element_type=jnp.float32) + ba1[...], 0.0)
    z = jnp.dot(a.astype(jnp.bfloat16), wa2[...],
                preferred_element_type=jnp.float32) + ba2[...]
    attn = pl.reciprocal(1.0 + jnp.exp(-z), approx=True)   # exp + rcp both on EUP
    out_f32 = out_f32 * attn
    out_bf = out_f32.astype(jnp.bfloat16)

    # ---- final head: Linear(128,64) -> ReLU -> Dropout[eval: id] -> Linear(64,1)
    wf1, bf1, wf2r, bf2 = take(4)
    f = jnp.maximum(
        jnp.dot(out_bf, wf1[...], preferred_element_type=jnp.float32) + bf1[...], 0.0)
    # (TB,64)@(64,1) as VPU multiply + lane reduction (skip an N=1 MXU pass).
    o_ref[...] = jnp.sum(f * wf2r[...], axis=-1, keepdims=True) + bf2[...]


def deep_surv_forward(x, prepared_params, tb=1024):
    """Pallas-call wrapper: batch-tiled grid, weights resident across steps."""
    B = x.shape[0]
    tb = min(tb, _round_up(B, 8))           # small batches -> single small tile
    Bp = _round_up(B, tb)

    xp = x.astype(jnp.bfloat16)
    if Bp != B:
        xp = jnp.pad(xp, ((0, Bp - B), (0, 0)))

    in_specs = [pl.BlockSpec((tb, INPUT_DIM), lambda i: (i, 0))]
    for prm in prepared_params:
        # full-shape block, constant index -> DMA'd once, stays resident.
        in_specs.append(pl.BlockSpec(prm.shape, lambda i: (0, 0)))

    out = pl.pallas_call(
        deep_surv_kernel,
        out_shape=jax.ShapeDtypeStruct((Bp, 1), jnp.float32),
        grid=(Bp // tb,),
        in_specs=in_specs,
        out_specs=pl.BlockSpec((tb, 1), lambda i: (i, 0)),
        compiler_params=pltpu.CompilerParams(
            dimension_semantics=("parallel",),      # megacore on v7x
            vmem_limit_bytes=32 * 1024 * 1024,      # raise v5e's 16 MiB default
        ),
    )(xp, *prepared_params)
    return out[:B]


def init_params(key):
    """Deterministic synthetic 'PyTorch-like' parameters (shapes from DeepSurv.__init__)."""
    params = []
    keys = iter(jax.random.split(key, 128))

    def lin(in_d, out_d):
        w = jax.random.normal(next(keys), (in_d, out_d), jnp.float32) / jnp.sqrt(float(in_d))
        b = jax.random.normal(next(keys), (1, out_d), jnp.float32) * 0.01
        return w, b

    dims = [INPUT_DIM] + HIDDEN_DIMS
    for i in range(len(HIDDEN_DIMS)):
        w, b = lin(dims[i], dims[i + 1])
        h = dims[i + 1]
        gamma = 1.0 + 0.1 * jax.random.normal(next(keys), (1, h), jnp.float32)
        beta = 0.05 * jax.random.normal(next(keys), (1, h), jnp.float32)
        mean = 0.05 * jax.random.normal(next(keys), (1, h), jnp.float32)
        var = 0.9 + 0.1 * jnp.abs(jax.random.normal(next(keys), (1, h), jnp.float32))
        params += [w, b, gamma, beta, mean, var]

    for hd in HIDDEN_DIMS:
        w, b = lin(hd, hd)
        params += [w, b]

    wa1, ba1 = lin(HIDDEN_DIMS[-1], ATTN_HID)
    wa2, ba2 = lin(ATTN_HID, HIDDEN_DIMS[-1])
    params += [wa1, ba1, wa2, ba2]

    wf1, bf1 = lin(HIDDEN_DIMS[-1], FINAL_HID)
    wf2, bf2 = lin(FINAL_HID, 1)
    params += [wf1, bf1, wf2, bf2]
    return params


def prepare_params(raw):
    """Fold inference BatchNorm into the Linear, cast matmul weights to bf16."""
    idx = 0

    def take(n):
        nonlocal idx
        out = raw[idx:idx + n]
        idx += n
        return out

    prepared = []
    for _ in range(len(HIDDEN_DIMS)):
        w, b, gamma, beta, mean, var = take(6)
        scale = gamma / jnp.sqrt(var + BN_EPS)       # (1, H)
        shift = beta - mean * scale
        prepared += [(w * scale).astype(jnp.bfloat16),
                     (b * scale + shift).astype(jnp.float32)]
    for _ in range(len(HIDDEN_DIMS)):
        w, b = take(2)
        prepared += [w.astype(jnp.bfloat16), b.astype(jnp.float32)]
    wa1, ba1, wa2, ba2 = take(4)
    prepared += [wa1.astype(jnp.bfloat16), ba1.astype(jnp.float32),
                 wa2.astype(jnp.bfloat16), ba2.astype(jnp.float32)]
    wf1, bf1, wf2, bf2 = take(4)
    prepared += [wf1.astype(jnp.bfloat16), bf1.astype(jnp.float32),
                 wf2.reshape(1, FINAL_HID).astype(jnp.float32),
                 bf2.reshape(1, 1).astype(jnp.float32)]
    return prepared


def deep_surv_reference(x, prepared):
    """Pure-JAX reference with the same bf16/f32 mixed precision as the kernel."""
    idx = 0

    def take(n):
        nonlocal idx
        out = prepared[idx:idx + n]
        idx += n
        return out

    out_bf = x.astype(jnp.bfloat16)
    out_f32 = None
    for _ in range(len(HIDDEN_DIMS)):
        w, b = take(2)
        h = jnp.dot(out_bf, w, preferred_element_type=jnp.float32) + b
        h = _leaky_relu(h, 0.1)
        out_f32 = h
        out_bf = h.astype(jnp.bfloat16)
    for _ in range(len(HIDDEN_DIMS)):
        w, b = take(2)
        res = jnp.dot(out_bf, w, preferred_element_type=jnp.float32) + b
        out_f32 = jnp.maximum(out_f32 + res, 0.0)
        out_bf = out_f32.astype(jnp.bfloat16)
    wa1, ba1, wa2, ba2 = take(4)
    a = jnp.maximum(jnp.dot(out_bf, wa1, preferred_element_type=jnp.float32) + ba1, 0.0)
    z = jnp.dot(a.astype(jnp.bfloat16), wa2, preferred_element_type=jnp.float32) + ba2
    attn = 1.0 / (1.0 + jnp.exp(-z))     # exact sigmoid (kernel uses approx rcp)
    out_f32 = out_f32 * attn
    out_bf = out_f32.astype(jnp.bfloat16)
    wf1, bf1, wf2r, bf2 = take(4)
    f = jnp.maximum(jnp.dot(out_bf, wf1, preferred_element_type=jnp.float32) + bf1, 0.0)
    return jnp.sum(f * wf2r, axis=-1, keepdims=True) + bf2


if __name__ == "__main__":
    key = jax.random.PRNGKey(0)
    k_param, k_x = jax.random.split(key)
    raw_params = init_params(k_param)
    params = prepare_params(raw_params)

    B = 8
    x = jax.random.normal(k_x, (B, INPUT_DIM), jnp.float32)

    out = deep_surv_forward(x, params)
    out = jax.block_until_ready(out)

    ref = deep_surv_reference(x, params)
    assert out.shape == (B, 1), out.shape
    # Only intended delta vs. reference: approx EUP reciprocal in the sigmoid.
    assert jnp.allclose(out, ref, atol=2e-2, rtol=2e-2), (out, ref)
    print("KERNEL_OK")
</pallas_src>

<mosaic_0001>
module attributes {stable_mosaic.version = 11 : i64} {
  func.func @deep_surv_kernel(%arg0: i32, %arg1: memref<8x32xbf16, #tpu.memory_space<vmem>>, %arg2: memref<32x128xbf16, #tpu.memory_space<vmem>>, %arg3: memref<1x128xf32, #tpu.memory_space<vmem>>, %arg4: memref<128x128xbf16, #tpu.memory_space<vmem>>, %arg5: memref<1x128xf32, #tpu.memory_space<vmem>>, %arg6: memref<128x128xbf16, #tpu.memory_space<vmem>>, %arg7: memref<1x128xf32, #tpu.memory_space<vmem>>, %arg8: memref<128x128xbf16, #tpu.memory_space<vmem>>, %arg9: memref<1x128xf32, #tpu.memory_space<vmem>>, %arg10: memref<128x128xbf16, #tpu.memory_space<vmem>>, %arg11: memref<1x128xf32, #tpu.memory_space<vmem>>, %arg12: memref<128x128xbf16, #tpu.memory_space<vmem>>, %arg13: memref<1x128xf32, #tpu.memory_space<vmem>>, %arg14: memref<128x128xbf16, #tpu.memory_space<vmem>>, %arg15: memref<1x128xf32, #tpu.memory_space<vmem>>, %arg16: memref<128x128xbf16, #tpu.memory_space<vmem>>, %arg17: memref<1x128xf32, #tpu.memory_space<vmem>>, %arg18: memref<128x64xbf16, #tpu.memory_space<vmem>>, %arg19: memref<1x64xf32, #tpu.memory_space<vmem>>, %arg20: memref<64x128xbf16, #tpu.memory_space<vmem>>, %arg21: memref<1x128xf32, #tpu.memory_space<vmem>>, %arg22: memref<128x64xbf16, #tpu.memory_space<vmem>>, %arg23: memref<1x64xf32, #tpu.memory_space<vmem>>, %arg24: memref<1x64xf32, #tpu.memory_space<vmem>>, %arg25: memref<1x1xf32, #tpu.memory_space<vmem>>, %arg26: memref<8x1xf32, #tpu.memory_space<vmem>>) attributes {dimension_semantics = [#tpu.dimension_semantics<parallel>], iteration_bounds = array<i64: 1>, scalar_prefetch = 0 : i64, scratch_operands = 0 : i64, tpu.core_type = #tpu.core_type<tc>, window_params = [{transform_indices = @transform_0, window_bounds = array<i64: 8, 32>}, {pipeline_mode = #tpu.pipeline_mode<synchronous>, transform_indices = @transform_1, window_bounds = array<i64: 32, 128>}, {pipeline_mode = #tpu.pipeline_mode<synchronous>, transform_indices = @transform_2, window_bounds = array<i64: 1, 128>}, {pipeline_mode = #tpu.pipeline_mode<synchronous>, transform_indices = @transform_3, window_bounds = array<i64: 128, 128>}, {pipeline_mode = #tpu.pipeline_mode<synchronous>, transform_indices = @transform_4, window_bounds = array<i64: 1, 128>}, {pipeline_mode = #tpu.pipeline_mode<synchronous>, transform_indices = @transform_5, window_bounds = array<i64: 128, 128>}, {pipeline_mode = #tpu.pipeline_mode<synchronous>, transform_indices = @transform_6, window_bounds = array<i64: 1, 128>}, {pipeline_mode = #tpu.pipeline_mode<synchronous>, transform_indices = @transform_7, window_bounds = array<i64: 128, 128>}, {pipeline_mode = #tpu.pipeline_mode<synchronous>, transform_indices = @transform_8, window_bounds = array<i64: 1, 128>}, {pipeline_mode = #tpu.pipeline_mode<synchronous>, transform_indices = @transform_9, window_bounds = array<i64: 128, 128>}, {pipeline_mode = #tpu.pipeline_mode<synchronous>, transform_indices = @transform_10, window_bounds = array<i64: 1, 128>}, {pipeline_mode = #tpu.pipeline_mode<synchronous>, transform_indices = @transform_11, window_bounds = array<i64: 128, 128>}, {pipeline_mode = #tpu.pipeline_mode<synchronous>, transform_indices = @transform_12, window_bounds = array<i64: 1, 128>}, {pipeline_mode = #tpu.pipeline_mode<synchronous>, transform_indices = @transform_13, window_bounds = array<i64: 128, 128>}, {pipeline_mode = #tpu.pipeline_mode<synchronous>, transform_indices = @transform_14, window_bounds = array<i64: 1, 128>}, {pipeline_mode = #tpu.pipeline_mode<synchronous>, transform_indices = @transform_15, window_bounds = array<i64: 128, 128>}, {pipeline_mode = #tpu.pipeline_mode<synchronous>, transform_indices = @transform_16, window_bounds = array<i64: 1, 128>}, {pipeline_mode = #tpu.pipeline_mode<synchronous>, transform_indices = @transform_17, window_bounds = array<i64: 128, 64>}, {pipeline_mode = #tpu.pipeline_mode<synchronous>, transform_indices = @transform_18, window_bounds = array<i64: 1, 64>}, {pipeline_mode = #tpu.pipeline_mode<synchronous>, transform_indices = @transform_19, window_bounds = array<i64: 64, 128>}, {pipeline_mode = #tpu.pipeline_mode<synchronous>, transform_indices = @transform_20, window_bounds = array<i64: 1, 128>}, {pipeline_mode = #tpu.pipeline_mode<synchronous>, transform_indices = @transform_21, window_bounds = array<i64: 128, 64>}, {pipeline_mode = #tpu.pipeline_mode<synchronous>, transform_indices = @transform_22, window_bounds = array<i64: 1, 64>}, {pipeline_mode = #tpu.pipeline_mode<synchronous>, transform_indices = @transform_23, window_bounds = array<i64: 1, 64>}, {pipeline_mode = #tpu.pipeline_mode<synchronous>, transform_indices = @transform_24, window_bounds = array<i64: 1, 1>}, {transform_indices = @transform_25, window_bounds = array<i64: 8, 1>}]} {
    %c0 = arith.constant 0 : index
    %c0_0 = arith.constant 0 : index
    %0 = vector.load %arg1[%c0, %c0_0] : memref<8x32xbf16, #tpu.memory_space<vmem>>, vector<8x32xbf16>
    %c0_1 = arith.constant 0 : index
    %c0_2 = arith.constant 0 : index
    %1 = vector.load %arg2[%c0_1, %c0_2] : memref<32x128xbf16, #tpu.memory_space<vmem>>, vector<32x128xbf16>
    %cst = arith.constant dense<0.000000e+00> : vector<8x128xf32>
    %2 = tpu.matmul %0, %1, %cst {dimension_numbers = #tpu.dot_dimension_numbers<[1], [0], [0], [1], [0, 0, 1, 1], [], []>} : vector<8x32xbf16>, vector<32x128xbf16>, vector<8x128xf32> -> vector<8x128xf32>
    %c0_3 = arith.constant 0 : index
    %c0_4 = arith.constant 0 : index
    %3 = vector.load %arg3[%c0_3, %c0_4] : memref<1x128xf32, #tpu.memory_space<vmem>>, vector<1x128xf32>
    %4 = vector.broadcast %3 : vector<1x128xf32> to vector<8x128xf32>
    %5 = arith.addf %2, %4 : vector<8x128xf32>
    %cst_5 = arith.constant 0.000000e+00 : f32
    %6 = vector.broadcast %cst_5 : f32 to vector<8x128xf32>
    %7 = arith.cmpf ogt, %5, %6 : vector<8x128xf32>
    %cst_6 = arith.constant 1.000000e-01 : f32
    %8 = vector.broadcast %cst_6 : f32 to vector<8x128xf32>
    %9 = arith.mulf %8, %5 : vector<8x128xf32>
    %10 = arith.select %7, %5, %9 : vector<8x128xi1>, vector<8x128xf32>
    %11 = arith.truncf %10 : vector<8x128xf32> to vector<8x128xbf16>
    %c0_7 = arith.constant 0 : index
    %c0_8 = arith.constant 0 : index
    %12 = vector.load %arg4[%c0_7, %c0_8] : memref<128x128xbf16, #tpu.memory_space<vmem>>, vector<128x128xbf16>
    %cst_9 = arith.constant dense<0.000000e+00> : vector<8x128xf32>
    %13 = tpu.matmul %11, %12, %cst_9 {dimension_numbers = #tpu.dot_dimension_numbers<[1], [0], [0], [1], [0, 0, 1, 1], [], []>} : vector<8x128xbf16>, vector<128x128xbf16>, vector<8x128xf32> -> vector<8x128xf32>
    %c0_10 = arith.constant 0 : index
    %c0_11 = arith.constant 0 : index
    %14 = vector.load %arg5[%c0_10, %c0_11] : memref<1x128xf32, #tpu.memory_space<vmem>>, vector<1x128xf32>
    %15 = vector.broadcast %14 : vector<1x128xf32> to vector<8x128xf32>
    %16 = arith.addf %13, %15 : vector<8x128xf32>
    %cst_12 = arith.constant 0.000000e+00 : f32
    %17 = vector.broadcast %cst_12 : f32 to vector<8x128xf32>
    %18 = arith.cmpf ogt, %16, %17 : vector<8x128xf32>
    %cst_13 = arith.constant 1.000000e-01 : f32
    %19 = vector.broadcast %cst_13 : f32 to vector<8x128xf32>
    %20 = arith.mulf %19, %16 : vector<8x128xf32>
    %21 = arith.select %18, %16, %20 : vector<8x128xi1>, vector<8x128xf32>
    %22 = arith.truncf %21 : vector<8x128xf32> to vector<8x128xbf16>
    %c0_14 = arith.constant 0 : index
    %c0_15 = arith.constant 0 : index
    %23 = vector.load %arg6[%c0_14, %c0_15] : memref<128x128xbf16, #tpu.memory_space<vmem>>, vector<128x128xbf16>
    %cst_16 = arith.constant dense<0.000000e+00> : vector<8x128xf32>
    %24 = tpu.matmul %22, %23, %cst_16 {dimension_numbers = #tpu.dot_dimension_numbers<[1], [0], [0], [1], [0, 0, 1, 1], [], []>} : vector<8x128xbf16>, vector<128x128xbf16>, vector<8x128xf32> -> vector<8x128xf32>
    %c0_17 = arith.constant 0 : index
    %c0_18 = arith.constant 0 : index
    %25 = vector.load %arg7[%c0_17, %c0_18] : memref<1x128xf32, #tpu.memory_space<vmem>>, vector<1x128xf32>
    %26 = vector.broadcast %25 : vector<1x128xf32> to vector<8x128xf32>
    %27 = arith.addf %24, %26 : vector<8x128xf32>
    %cst_19 = arith.constant 0.000000e+00 : f32
    %28 = vector.broadcast %cst_19 : f32 to vector<8x128xf32>
    %29 = arith.cmpf ogt, %27, %28 : vector<8x128xf32>
    %cst_20 = arith.constant 1.000000e-01 : f32
    %30 = vector.broadcast %cst_20 : f32 to vector<8x128xf32>
    %31 = arith.mulf %30, %27 : vector<8x128xf32>
    %32 = arith.select %29, %27, %31 : vector<8x128xi1>, vector<8x128xf32>
    %33 = arith.truncf %32 : vector<8x128xf32> to vector<8x128xbf16>
    %c0_21 = arith.constant 0 : index
    %c0_22 = arith.constant 0 : index
    %34 = vector.load %arg8[%c0_21, %c0_22] : memref<128x128xbf16, #tpu.memory_space<vmem>>, vector<128x128xbf16>
    %cst_23 = arith.constant dense<0.000000e+00> : vector<8x128xf32>
    %35 = tpu.matmul %33, %34, %cst_23 {dimension_numbers = #tpu.dot_dimension_numbers<[1], [0], [0], [1], [0, 0, 1, 1], [], []>} : vector<8x128xbf16>, vector<128x128xbf16>, vector<8x128xf32> -> vector<8x128xf32>
    %c0_24 = arith.constant 0 : index
    %c0_25 = arith.constant 0 : index
    %36 = vector.load %arg9[%c0_24, %c0_25] : memref<1x128xf32, #tpu.memory_space<vmem>>, vector<1x128xf32>
    %37 = vector.broadcast %36 : vector<1x128xf32> to vector<8x128xf32>
    %38 = arith.addf %35, %37 : vector<8x128xf32>
    %cst_26 = arith.constant 0.000000e+00 : f32
    %39 = vector.broadcast %cst_26 : f32 to vector<8x128xf32>
    %40 = arith.cmpf ogt, %38, %39 : vector<8x128xf32>
    %cst_27 = arith.constant 1.000000e-01 : f32
    %41 = vector.broadcast %cst_27 : f32 to vector<8x128xf32>
    %42 = arith.mulf %41, %38 : vector<8x128xf32>
    %43 = arith.select %40, %38, %42 : vector<8x128xi1>, vector<8x128xf32>
    %44 = arith.truncf %43 : vector<8x128xf32> to vector<8x128xbf16>
    %c0_28 = arith.constant 0 : index
    %c0_29 = arith.constant 0 : index
    %45 = vector.load %arg10[%c0_28, %c0_29] : memref<128x128xbf16, #tpu.memory_space<vmem>>, vector<128x128xbf16>
    %cst_30 = arith.constant dense<0.000000e+00> : vector<8x128xf32>
    %46 = tpu.matmul %44, %45, %cst_30 {dimension_numbers = #tpu.dot_dimension_numbers<[1], [0], [0], [1], [0, 0, 1, 1], [], []>} : vector<8x128xbf16>, vector<128x128xbf16>, vector<8x128xf32> -> vector<8x128xf32>
    %c0_31 = arith.constant 0 : index
    %c0_32 = arith.constant 0 : index
    %47 = vector.load %arg11[%c0_31, %c0_32] : memref<1x128xf32, #tpu.memory_space<vmem>>, vector<1x128xf32>
    %48 = vector.broadcast %47 : vector<1x128xf32> to vector<8x128xf32>
    %49 = arith.addf %46, %48 : vector<8x128xf32>
    %50 = arith.addf %43, %49 : vector<8x128xf32>
    %cst_33 = arith.constant 0.000000e+00 : f32
    %51 = vector.broadcast %cst_33 : f32 to vector<8x128xf32>
    %52 = arith.maximumf %50, %51 : vector<8x128xf32>
    %53 = arith.truncf %52 : vector<8x128xf32> to vector<8x128xbf16>
    %c0_34 = arith.constant 0 : index
    %c0_35 = arith.constant 0 : index
    %54 = vector.load %arg12[%c0_34, %c0_35] : memref<128x128xbf16, #tpu.memory_space<vmem>>, vector<128x128xbf16>
    %cst_36 = arith.constant dense<0.000000e+00> : vector<8x128xf32>
    %55 = tpu.matmul %53, %54, %cst_36 {dimension_numbers = #tpu.dot_dimension_numbers<[1], [0], [0], [1], [0, 0, 1, 1], [], []>} : vector<8x128xbf16>, vector<128x128xbf16>, vector<8x128xf32> -> vector<8x128xf32>
    %c0_37 = arith.constant 0 : index
    %c0_38 = arith.constant 0 : index
    %56 = vector.load %arg13[%c0_37, %c0_38] : memref<1x128xf32, #tpu.memory_space<vmem>>, vector<1x128xf32>
    %57 = vector.broadcast %56 : vector<1x128xf32> to vector<8x128xf32>
    %58 = arith.addf %55, %57 : vector<8x128xf32>
    %59 = arith.addf %52, %58 : vector<8x128xf32>
    %cst_39 = arith.constant 0.000000e+00 : f32
    %60 = vector.broadcast %cst_39 : f32 to vector<8x128xf32>
    %61 = arith.maximumf %59, %60 : vector<8x128xf32>
    %62 = arith.truncf %61 : vector<8x128xf32> to vector<8x128xbf16>
    %c0_40 = arith.constant 0 : index
    %c0_41 = arith.constant 0 : index
    %63 = vector.load %arg14[%c0_40, %c0_41] : memref<128x128xbf16, #tpu.memory_space<vmem>>, vector<128x128xbf16>
    %cst_42 = arith.constant dense<0.000000e+00> : vector<8x128xf32>
    %64 = tpu.matmul %62, %63, %cst_42 {dimension_numbers = #tpu.dot_dimension_numbers<[1], [0], [0], [1], [0, 0, 1, 1], [], []>} : vector<8x128xbf16>, vector<128x128xbf16>, vector<8x128xf32> -> vector<8x128xf32>
    %c0_43 = arith.constant 0 : index
    %c0_44 = arith.constant 0 : index
    %65 = vector.load %arg15[%c0_43, %c0_44] : memref<1x128xf32, #tpu.memory_space<vmem>>, vector<1x128xf32>
    %66 = vector.broadcast %65 : vector<1x128xf32> to vector<8x128xf32>
    %67 = arith.addf %64, %66 : vector<8x128xf32>
    %68 = arith.addf %61, %67 : vector<8x128xf32>
    %cst_45 = arith.constant 0.000000e+00 : f32
    %69 = vector.broadcast %cst_45 : f32 to vector<8x128xf32>
    %70 = arith.maximumf %68, %69 : vector<8x128xf32>
    %71 = arith.truncf %70 : vector<8x128xf32> to vector<8x128xbf16>
    %c0_46 = arith.constant 0 : index
    %c0_47 = arith.constant 0 : index
    %72 = vector.load %arg16[%c0_46, %c0_47] : memref<128x128xbf16, #tpu.memory_space<vmem>>, vector<128x128xbf16>
    %cst_48 = arith.constant dense<0.000000e+00> : vector<8x128xf32>
    %73 = tpu.matmul %71, %72, %cst_48 {dimension_numbers = #tpu.dot_dimension_numbers<[1], [0], [0], [1], [0, 0, 1, 1], [], []>} : vector<8x128xbf16>, vector<128x128xbf16>, vector<8x128xf32> -> vector<8x128xf32>
    %c0_49 = arith.constant 0 : index
    %c0_50 = arith.constant 0 : index
    %74 = vector.load %arg17[%c0_49, %c0_50] : memref<1x128xf32, #tpu.memory_space<vmem>>, vector<1x128xf32>
    %75 = vector.broadcast %74 : vector<1x128xf32> to vector<8x128xf32>
    %76 = arith.addf %73, %75 : vector<8x128xf32>
    %77 = arith.addf %70, %76 : vector<8x128xf32>
    %cst_51 = arith.constant 0.000000e+00 : f32
    %78 = vector.broadcast %cst_51 : f32 to vector<8x128xf32>
    %79 = arith.maximumf %77, %78 : vector<8x128xf32>
    %80 = arith.truncf %79 : vector<8x128xf32> to vector<8x128xbf16>
    %c0_52 = arith.constant 0 : index
    %c0_53 = arith.constant 0 : index
    %81 = vector.load %arg18[%c0_52, %c0_53] : memref<128x64xbf16, #tpu.memory_space<vmem>>, vector<128x64xbf16>
    %cst_54 = arith.constant dense<0.000000e+00> : vector<8x64xf32>
    %82 = tpu.matmul %80, %81, %cst_54 {dimension_numbers = #tpu.dot_dimension_numbers<[1], [0], [0], [1], [0, 0, 1, 1], [], []>} : vector<8x128xbf16>, vector<128x64xbf16>, vector<8x64xf32> -> vector<8x64xf32>
    %c0_55 = arith.constant 0 : index
    %c0_56 = arith.constant 0 : index
    %83 = vector.load %arg19[%c0_55, %c0_56] : memref<1x64xf32, #tpu.memory_space<vmem>>, vector<1x64xf32>
    %84 = vector.broadcast %83 : vector<1x64xf32> to vector<8x64xf32>
    %85 = arith.addf %82, %84 : vector<8x64xf32>
    %cst_57 = arith.constant 0.000000e+00 : f32
    %86 = vector.broadcast %cst_57 : f32 to vector<8x64xf32>
    %87 = arith.maximumf %85, %86 : vector<8x64xf32>
    %88 = arith.truncf %87 : vector<8x64xf32> to vector<8x64xbf16>
    %c0_58 = arith.constant 0 : index
    %c0_59 = arith.constant 0 : index
    %89 = vector.load %arg20[%c0_58, %c0_59] : memref<64x128xbf16, #tpu.memory_space<vmem>>, vector<64x128xbf16>
    %cst_60 = arith.constant dense<0.000000e+00> : vector<8x128xf32>
    %90 = tpu.matmul %88, %89, %cst_60 {dimension_numbers = #tpu.dot_dimension_numbers<[1], [0], [0], [1], [0, 0, 1, 1], [], []>} : vector<8x64xbf16>, vector<64x128xbf16>, vector<8x128xf32> -> vector<8x128xf32>
    %c0_61 = arith.constant 0 : index
    %c0_62 = arith.constant 0 : index
    %91 = vector.load %arg21[%c0_61, %c0_62] : memref<1x128xf32, #tpu.memory_space<vmem>>, vector<1x128xf32>
    %92 = vector.broadcast %91 : vector<1x128xf32> to vector<8x128xf32>
    %93 = arith.addf %90, %92 : vector<8x128xf32>
    %cst_63 = arith.constant 0.000000e+00 : f32
    %94 = vector.broadcast %cst_63 : f32 to vector<8x128xf32>
    %95 = arith.subf %94, %93 : vector<8x128xf32>
    %96 = math.exp %95 : vector<8x128xf32>
    %cst_64 = arith.constant 1.000000e+00 : f32
    %97 = vector.broadcast %cst_64 : f32 to vector<8x128xf32>
    %98 = arith.addf %97, %96 : vector<8x128xf32>
    %99 = tpu.reciprocal %98 {approx = true} : vector<8x128xf32> -> vector<8x128xf32>
    %100 = arith.mulf %79, %99 : vector<8x128xf32>
    %101 = arith.truncf %100 : vector<8x128xf32> to vector<8x128xbf16>
    %c0_65 = arith.constant 0 : index
    %c0_66 = arith.constant 0 : index
    %102 = vector.load %arg22[%c0_65, %c0_66] : memref<128x64xbf16, #tpu.memory_space<vmem>>, vector<128x64xbf16>
    %cst_67 = arith.constant dense<0.000000e+00> : vector<8x64xf32>
    %103 = tpu.matmul %101, %102, %cst_67 {dimension_numbers = #tpu.dot_dimension_numbers<[1], [0], [0], [1], [0, 0, 1, 1], [], []>} : vector<8x128xbf16>, vector<128x64xbf16>, vector<8x64xf32> -> vector<8x64xf32>
    %c0_68 = arith.constant 0 : index
    %c0_69 = arith.constant 0 : index
    %104 = vector.load %arg23[%c0_68, %c0_69] : memref<1x64xf32, #tpu.memory_space<vmem>>, vector<1x64xf32>
    %105 = vector.broadcast %104 : vector<1x64xf32> to vector<8x64xf32>
    %106 = arith.addf %103, %105 : vector<8x64xf32>
    %cst_70 = arith.constant 0.000000e+00 : f32
    %107 = vector.broadcast %cst_70 : f32 to vector<8x64xf32>
    %108 = arith.maximumf %106, %107 : vector<8x64xf32>
    %c0_71 = arith.constant 0 : index
    %c0_72 = arith.constant 0 : index
    %109 = vector.load %arg24[%c0_71, %c0_72] : memref<1x64xf32, #tpu.memory_space<vmem>>, vector<1x64xf32>
    %110 = vector.broadcast %109 : vector<1x64xf32> to vector<8x64xf32>
    %111 = arith.mulf %108, %110 : vector<8x64xf32>
    %cst_73 = arith.constant dense<0.000000e+00> : vector<8xf32>
    %112 = vector.multi_reduction <add>, %111, %cst_73 [1] : vector<8x64xf32> to vector<8xf32>
    %113 = vector.shape_cast %112 : vector<8xf32> to vector<8x1xf32>
    %c0_74 = arith.constant 0 : index
    %c0_75 = arith.constant 0 : index
    %114 = vector.load %arg25[%c0_74, %c0_75] : memref<1x1xf32, #tpu.memory_space<vmem>>, vector<1x1xf32>
    %115 = vector.broadcast %114 : vector<1x1xf32> to vector<8x1xf32>
    %116 = arith.addf %113, %115 : vector<8x1xf32>
    %c0_76 = arith.constant 0 : index
    %c0_77 = arith.constant 0 : index
    %117 = vector.load %arg26[%c0_76, %c0_77] : memref<8x1xf32, #tpu.memory_space<vmem>>, vector<8x1xf32>
    tpu.vector_store %arg26[%c0_76, %c0_77], %116 {strides = array<i32>} : memref<8x1xf32, #tpu.memory_space<vmem>>, vector<8x1xf32>,
    return
  }
  func.func @transform_0(%arg0: i32) -> (i32, i32) {
    %c0_i32 = arith.constant 0 : i32
    %c0_i32_0 = arith.constant 0 : i32
    return %arg0, %c0_i32 : i32, i32
  }
  func.func @transform_1(%arg0: i32) -> (i32, i32) {
    %c0_i32 = arith.constant 0 : i32
    %c0_i32_0 = arith.constant 0 : i32
    %c0_i32_1 = arith.constant 0 : i32
    return %c0_i32, %c0_i32_0 : i32, i32
  }
  func.func @transform_2(%arg0: i32) -> (i32, i32) {
    %c0_i32 = arith.constant 0 : i32
    %c0_i32_0 = arith.constant 0 : i32
    %c0_i32_1 = arith.constant 0 : i32
    return %c0_i32, %c0_i32_0 : i32, i32
  }
  func.func @transform_3(%arg0: i32) -> (i32, i32) {
    %c0_i32 = arith.constant 0 : i32
    %c0_i32_0 = arith.constant 0 : i32
    %c0_i32_1 = arith.constant 0 : i32
    return %c0_i32, %c0_i32_0 : i32, i32
  }
  func.func @transform_4(%arg0: i32) -> (i32, i32) {
    %c0_i32 = arith.constant 0 : i32
    %c0_i32_0 = arith.constant 0 : i32
    %c0_i32_1 = arith.constant 0 : i32
    return %c0_i32, %c0_i32_0 : i32, i32
  }
  func.func @transform_5(%arg0: i32) -> (i32, i32) {
    %c0_i32 = arith.constant 0 : i32
    %c0_i32_0 = arith.constant 0 : i32
    %c0_i32_1 = arith.constant 0 : i32
    return %c0_i32, %c0_i32_0 : i32, i32
  }
  func.func @transform_6(%arg0: i32) -> (i32, i32) {
    %c0_i32 = arith.constant 0 : i32
    %c0_i32_0 = arith.constant 0 : i32
    %c0_i32_1 = arith.constant 0 : i32
    return %c0_i32, %c0_i32_0 : i32, i32
  }
  func.func @transform_7(%arg0: i32) -> (i32, i32) {
    %c0_i32 = arith.constant 0 : i32
    %c0_i32_0 = arith.constant 0 : i32
    %c0_i32_1 = arith.constant 0 : i32
    return %c0_i32, %c0_i32_0 : i32, i32
  }
  func.func @transform_8(%arg0: i32) -> (i32, i32) {
    %c0_i32 = arith.constant 0 : i32
    %c0_i32_0 = arith.constant 0 : i32
    %c0_i32_1 = arith.constant 0 : i32
    return %c0_i32, %c0_i32_0 : i32, i32
  }
  func.func @transform_9(%arg0: i32) -> (i32, i32) {
    %c0_i32 = arith.constant 0 : i32
    %c0_i32_0 = arith.constant 0 : i32
    %c0_i32_1 = arith.constant 0 : i32
    return %c0_i32, %c0_i32_0 : i32, i32
  }
  func.func @transform_10(%arg0: i32) -> (i32, i32) {
    %c0_i32 = arith.constant 0 : i32
    %c0_i32_0 = arith.constant 0 : i32
    %c0_i32_1 = arith.constant 0 : i32
    return %c0_i32, %c0_i32_0 : i32, i32
  }
  func.func @transform_11(%arg0: i32) -> (i32, i32) {
    %c0_i32 = arith.constant 0 : i32
    %c0_i32_0 = arith.constant 0 : i32
    %c0_i32_1 = arith.constant 0 : i32
    return %c0_i32, %c0_i32_0 : i32, i32
  }
  func.func @transform_12(%arg0: i32) -> (i32, i32) {
    %c0_i32 = arith.constant 0 : i32
    %c0_i32_0 = arith.constant 0 : i32
    %c0_i32_1 = arith.constant 0 : i32
    return %c0_i32, %c0_i32_0 : i32, i32
  }
  func.func @transform_13(%arg0: i32) -> (i32, i32) {
    %c0_i32 = arith.constant 0 : i32
    %c0_i32_0 = arith.constant 0 : i32
    %c0_i32_1 = arith.constant 0 : i32
    return %c0_i32, %c0_i32_0 : i32, i32
  }
  func.func @transform_14(%arg0: i32) -> (i32, i32) {
    %c0_i32 = arith.constant 0 : i32
    %c0_i32_0 = arith.constant 0 : i32
    %c0_i32_1 = arith.constant 0 : i32
    return %c0_i32, %c0_i32_0 : i32, i32
  }
  func.func @transform_15(%arg0: i32) -> (i32, i32) {
    %c0_i32 = arith.constant 0 : i32
    %c0_i32_0 = arith.constant 0 : i32
    %c0_i32_1 = arith.constant 0 : i32
    return %c0_i32, %c0_i32_0 : i32, i32
  }
  func.func @transform_16(%arg0: i32) -> (i32, i32) {
    %c0_i32 = arith.constant 0 : i32
    %c0_i32_0 = arith.constant 0 : i32
    %c0_i32_1 = arith.constant 0 : i32
    return %c0_i32, %c0_i32_0 : i32, i32
  }
  func.func @transform_17(%arg0: i32) -> (i32, i32) {
    %c0_i32 = arith.constant 0 : i32
    %c0_i32_0 = arith.constant 0 : i32
    %c0_i32_1 = arith.constant 0 : i32
    return %c0_i32, %c0_i32_0 : i32, i32
  }
  func.func @transform_18(%arg0: i32) -> (i32, i32) {
    %c0_i32 = arith.constant 0 : i32
    %c0_i32_0 = arith.constant 0 : i32
    %c0_i32_1 = arith.constant 0 : i32
    return %c0_i32, %c0_i32_0 : i32, i32
  }
  func.func @transform_19(%arg0: i32) -> (i32, i32) {
    %c0_i32 = arith.constant 0 : i32
    %c0_i32_0 = arith.constant 0 : i32
    %c0_i32_1 = arith.constant 0 : i32
    return %c0_i32, %c0_i32_0 : i32, i32
  }
  func.func @transform_20(%arg0: i32) -> (i32, i32) {
    %c0_i32 = arith.constant 0 : i32
    %c0_i32_0 = arith.constant 0 : i32
    %c0_i32_1 = arith.constant 0 : i32
    return %c0_i32, %c0_i32_0 : i32, i32
  }
  func.func @transform_21(%arg0: i32) -> (i32, i32) {
    %c0_i32 = arith.constant 0 : i32
    %c0_i32_0 = arith.constant 0 : i32
    %c0_i32_1 = arith.constant 0 : i32
    return %c0_i32, %c0_i32_0 : i32, i32
  }
  func.func @transform_22(%arg0: i32) -> (i32, i32) {
    %c0_i32 = arith.constant 0 : i32
    %c0_i32_0 = arith.constant 0 : i32
    %c0_i32_1 = arith.constant 0 : i32
    return %c0_i32, %c0_i32_0 : i32, i32
  }
  func.func @transform_23(%arg0: i32) -> (i32, i32) {
    %c0_i32 = arith.constant 0 : i32
    %c0_i32_0 = arith.constant 0 : i32
    %c0_i32_1 = arith.constant 0 : i32
    return %c0_i32, %c0_i32_0 : i32, i32
  }
  func.func @transform_24(%arg0: i32) -> (i32, i32) {
    %c0_i32 = arith.constant 0 : i32
    %c0_i32_0 = arith.constant 0 : i32
    %c0_i32_1 = arith.constant 0 : i32
    return %c0_i32, %c0_i32_0 : i32, i32
  }
  func.func @transform_25(%arg0: i32) -> (i32, i32) {
    %c0_i32 = arith.constant 0 : i32
    %c0_i32_0 = arith.constant 0 : i32
    return %arg0, %c0_i32 : i32, i32
  }
}

</mosaic_0001>

<llo_original>
// kernel: tpu_custom_call.1
$region0: #{tpu_custom_call.1}
  #allocation0 [shape = 'u32[]', space=smem, size = 0x4, offset = 0x4, fixed_abs, tag = 'smem constant byte address 0x4 - core index']
  #allocation1 [shape = 'u32[144,128]{1,0:T(1,128)}', space=vmem, size = 0x12000, scoped, tag = 'internal scratch']
  #allocation2 [shape = 'f32[1,1]{1,0:T(1,128)S(1)}', space=vmem, size = 0x200, scoped, tag = 'scoped memory for tpu_custom_call.1']
  %s0 = inlined_call_operand.hbm [shape: bf16[8,32], index: 0, kind: input, shape index: {}]
  %s1 = inlined_call_operand.hbm [shape: bf16[32,128], index: 1, kind: input, shape index: {}]
  %s2 = inlined_call_operand.hbm [shape: f32[1,128], index: 2, kind: input, shape index: {}]
  %s3 = inlined_call_operand.vmem [shape: bf16[128,128], index: 3, kind: input, shape index: {}]
  %s4 = inlined_call_operand.hbm [shape: f32[1,128], index: 4, kind: input, shape index: {}]
  %s5 = inlined_call_operand.vmem [shape: bf16[128,128], index: 5, kind: input, shape index: {}]
  %s6 = inlined_call_operand.hbm [shape: f32[1,128], index: 6, kind: input, shape index: {}]
  %s7 = inlined_call_operand.vmem [shape: bf16[128,128], index: 7, kind: input, shape index: {}]
  %s8 = inlined_call_operand.hbm [shape: f32[1,128], index: 8, kind: input, shape index: {}]
  %s9 = inlined_call_operand.hbm [shape: bf16[128,128], index: 9, kind: input, shape index: {}]
  %s10 = inlined_call_operand.hbm [shape: f32[1,128], index: 10, kind: input, shape index: {}]
  %s11 = inlined_call_operand.hbm [shape: bf16[128,128], index: 11, kind: input, shape index: {}]
  %s12 = inlined_call_operand.hbm [shape: f32[1,128], index: 12, kind: input, shape index: {}]
  %s13 = inlined_call_operand.hbm [shape: bf16[128,128], index: 13, kind: input, shape index: {}]
  %s14 = inlined_call_operand.hbm [shape: f32[1,128], index: 14, kind: input, shape index: {}]
  %s15 = inlined_call_operand.hbm [shape: bf16[128,128], index: 15, kind: input, shape index: {}]
  %s16 = inlined_call_operand.hbm [shape: f32[1,128], index: 16, kind: input, shape index: {}]
  %s17 = inlined_call_operand.vmem [shape: bf16[128,64], index: 17, kind: input, shape index: {}]
  %s18 = inlined_call_operand.vmem [shape: f32[1,64], index: 18, kind: input, shape index: {}]
  %s19 = inlined_call_operand.hbm [shape: bf16[64,128], index: 19, kind: input, shape index: {}]
  %s20 = inlined_call_operand.vmem [shape: f32[1,128], index: 20, kind: input, shape index: {}]
  %s21 = inlined_call_operand.vmem [shape: bf16[128,64], index: 21, kind: input, shape index: {}]
  %s22 = inlined_call_operand.vmem [shape: f32[1,64], index: 22, kind: input, shape index: {}]
  %s23 = inlined_call_operand.vmem [shape: f32[1,64], index: 23, kind: input, shape index: {}]
  %s24 = inlined_call_operand.<no memory space> [shape: f32[1,1], index: 24, kind: input, shape index: {}]
  %s25 = inlined_call_operand.vmem [shape: f32[8,1], index: 25, kind: output, shape index: {}]
  %s26 = sld [smem:[#allocation0]]
  $region170: #{tpu_custom_call.1} parent=0
    _
  %s28 = ssub.s32 1, %s26
  %s29 = scalar_select 0, %s28, %s26
  %v30 = vstv %s24
  %31 = vst [vmem:[#allocation2] sm:$0x1] %v30
  $region1: #{tpu_custom_call.1} parent=0
    #allocation3 [shape = 'u8[2048]{0}', space=vmem, size = 0x800, scoped, tag = 'input window, operand 0, single buffered']
    #allocation4 [shape = 's32[1]{0}', space=sflag, size = 0x4, scoped, tag = 'scoped memory for tpu_custom_call.1']
    #allocation5 [shape = 'u8[8192]{0}', space=vmem, size = 0x2000, scoped, tag = 'input window, operand 1, single buffered']
    #allocation6 [shape = 's32[1]{0}', space=sflag, size = 0x4, scoped, tag = 'scoped memory for tpu_custom_call.1']
    #allocation7 [shape = 'u8[512]{0}', space=vmem, size = 0x400, scoped, tag = 'input window, operand 2, single buffered']
    #allocation8 [shape = 'u8[512]{0}', space=vmem, size = 0x400, scoped, tag = 'input window, operand 4, single buffered']
    #allocation9 [shape = 's32[1]{0}', space=sflag, size = 0x4, scoped, tag = 'scoped memory for tpu_custom_call.1']
    #allocation10 [shape = 'u8[512]{0}', space=vmem, size = 0x400, scoped, tag = 'input window, operand 6, single buffered']
    #allocation11 [shape = 'u8[512]{0}', space=vmem, size = 0x400, scoped, tag = 'input window, operand 8, single buffered']
    #allocation12 [shape = 's32[1]{0}', space=sflag, size = 0x4, scoped, tag = 'scoped memory for tpu_custom_call.1']
    #allocation13 [shape = 'u8[32768]{0}', space=vmem, size = 0x8000, scoped, tag = 'input window, operand 9, single buffered']
    #allocation14 [shape = 'u8[512]{0}', space=vmem, size = 0x400, scoped, tag = 'input window, operand 10, single buffered']
    #allocation15 [shape = 's32[1]{0}', space=sflag, size = 0x4, scoped, tag = 'scoped memory for tpu_custom_call.1']
    #allocation16 [shape = 'u8[32768]{0}', space=vmem, size = 0x8000, scoped, tag = 'input window, operand 11, single buffered']
    #allocation17 [shape = 'u8[512]{0}', space=vmem, size = 0x400, scoped, tag = 'input window, operand 12, single buffered']
    #allocation18 [shape = 's32[1]{0}', space=sflag, size = 0x4, scoped, tag = 'scoped memory for tpu_custom_call.1']
    #allocation19 [shape = 'u8[32768]{0}', space=vmem, size = 0x8000, scoped, tag = 'input window, operand 13, single buffered']
    #allocation20 [shape = 'u8[512]{0}', space=vmem, size = 0x400, scoped, tag = 'input window, operand 14, single buffered']
    #allocation21 [shape = 's32[1]{0}', space=sflag, size = 0x4, scoped, tag = 'scoped memory for tpu_custom_call.1']
    #allocation22 [shape = 'u8[32768]{0}', space=vmem, size = 0x8000, scoped, tag = 'input window, operand 15, single buffered']
    #allocation23 [shape = 'u8[512]{0}', space=vmem, size = 0x400, scoped, tag = 'input window, operand 16, single buffered']
    #allocation24 [shape = 's32[1]{0}', space=sflag, size = 0x4, scoped, tag = 'scoped memory for tpu_custom_call.1']
    #allocation25 [shape = 'u8[16384]{0}', space=vmem, size = 0x4000, scoped, tag = 'input window, operand 19, single buffered']
    %32 = vsyncpa [#allocation4], 0
    %33 = vsyncpa [#allocation6], 0
    %34 = vsyncpa [#allocation9], 0
    %35 = vsyncpa [#allocation12], 0
    %36 = vsyncpa [#allocation15], 0
    %37 = vsyncpa [#allocation18], 0
    %38 = vsyncpa [#allocation21], 0
    %39 = vsyncpa [#allocation24], 0
    // Predicated region
    $region2: #{tpu_custom_call.1} parent=1 // pred_check
      _
    $region3: #{tpu_custom_call.1} parent=1 // pred_check_branch
      %41 = sbr.rel (0) target = $region5
    $region4: #{tpu_custom_call.1} parent=1 // pred_region
      %s43 = ssub.s32 64, 64
      %44 = vsyncadd [#allocation4], %s43
      %s46 = sshll.u32 [#allocation3], 4
      %s47 = int_to_ptr.vmem [resolvable:$true] %s46
      %49 = dma.hbm_to_vmem [thread:$0]  %s0, 64, %s47, [#allocation4]
    $region5: #{tpu_custom_call.1} parent=1 // pred_fallthru
      _
    // Predicated region
    $region6: #{tpu_custom_call.1} parent=1 // pred_check
      _
    $region7: #{tpu_custom_call.1} parent=1 // pred_check_branch
      %51 = sbr.rel (0) target = $region9
    $region8: #{tpu_custom_call.1} parent=1 // pred_region
      %s53 = ssub.s32 256, 256
      %54 = vsyncadd [#allocation6], %s53
      %s55 = sshll.u32 [#allocation5], 4
      %s56 = int_to_ptr.vmem [resolvable:$true] %s55
      %61 = dma.hbm_to_vmem [thread:$0]  %s1, 256, %s56, [#allocation6], 64, 64, 4
    $region9: #{tpu_custom_call.1} parent=1 // pred_fallthru
      _
    // Predicated region
    $region10: #{tpu_custom_call.1} parent=1 // pred_check
      _
    $region11: #{tpu_custom_call.1} parent=1 // pred_check_branch
      %63 = sbr.rel (0) target = $region13
    $region12: #{tpu_custom_call.1} parent=1 // pred_region
      %s65 = ssub.s32 16, 16
      %66 = vsyncadd [#allocation6], %s65
      %s68 = sshll.u32 [#allocation7], 4
      %s69 = int_to_ptr.vmem [resolvable:$true] %s68
      %71 = dma.hbm_to_vmem [thread:$0]  %s2, 16, %s69, [#allocation6]
    $region13: #{tpu_custom_call.1} parent=1 // pred_fallthru
      _
    // Predicated region
    $region14: #{tpu_custom_call.1} parent=1 // pred_check
      _
    $region15: #{tpu_custom_call.1} parent=1 // pred_check_branch
      %73 = sbr.rel (0) target = $region17
    $region16: #{tpu_custom_call.1} parent=1 // pred_region
      _
    $region17: #{tpu_custom_call.1} parent=1 // pred_fallthru
      _
    // Predicated region
    $region18: #{tpu_custom_call.1} parent=1 // pred_check
      _
    $region19: #{tpu_custom_call.1} parent=1 // pred_check_branch
      %75 = sbr.rel (0) target = $region21
    $region20: #{tpu_custom_call.1} parent=1 // pred_region
      %s77 = ssub.s32 16, 16
      %78 = vsyncadd [#allocation9], %s77
      %s80 = sshll.u32 [#allocation8], 4
      %s81 = int_to_ptr.vmem [resolvable:$true] %s80
      %83 = dma.hbm_to_vmem [thread:$0]  %s4, 16, %s81, [#allocation9]
    $region21: #{tpu_custom_call.1} parent=1 // pred_fallthru
      _
    // Predicated region
    $region22: #{tpu_custom_call.1} parent=1 // pred_check
      _
    $region23: #{tpu_custom_call.1} parent=1 // pred_check_branch
      %85 = sbr.rel (0) target = $region25
    $region24: #{tpu_custom_call.1} parent=1 // pred_region
      _
    $region25: #{tpu_custom_call.1} parent=1 // pred_fallthru
      _
    // Predicated region
    $region26: #{tpu_custom_call.1} parent=1 // pred_check
      _
    $region27: #{tpu_custom_call.1} parent=1 // pred_check_branch
      %87 = sbr.rel (0) target = $region29
    $region28: #{tpu_custom_call.1} parent=1 // pred_region
      %s89 = ssub.s32 16, 16
      %90 = vsyncadd [#allocation9], %s89
      %s92 = sshll.u32 [#allocation10], 4
      %s93 = int_to_ptr.vmem [resolvable:$true] %s92
      %95 = dma.hbm_to_vmem [thread:$0]  %s6, 16, %s93, [#allocation9]
    $region29: #{tpu_custom_call.1} parent=1 // pred_fallthru
      _
    // Predicated region
    $region30: #{tpu_custom_call.1} parent=1 // pred_check
      _
    $region31: #{tpu_custom_call.1} parent=1 // pred_check_branch
      %97 = sbr.rel (0) target = $region33
    $region32: #{tpu_custom_call.1} parent=1 // pred_region
      _
    $region33: #{tpu_custom_call.1} parent=1 // pred_fallthru
      _
    // Predicated region
    $region34: #{tpu_custom_call.1} parent=1 // pred_check
      _
    $region35: #{tpu_custom_call.1} parent=1 // pred_check_branch
      %99 = sbr.rel (0) target = $region37
    $region36: #{tpu_custom_call.1} parent=1 // pred_region
      %s101 = ssub.s32 16, 16
      %102 = vsyncadd [#allocation12], %s101
      %s104 = sshll.u32 [#allocation11], 4
      %s105 = int_to_ptr.vmem [resolvable:$true] %s104
      %107 = dma.hbm_to_vmem [thread:$0]  %s8, 16, %s105, [#allocation12]
    $region37: #{tpu_custom_call.1} parent=1 // pred_fallthru
      _
    // Predicated region
    $region38: #{tpu_custom_call.1} parent=1 // pred_check
      _
    $region39: #{tpu_custom_call.1} parent=1 // pred_check_branch
      %109 = sbr.rel (0) target = $region41
    $region40: #{tpu_custom_call.1} parent=1 // pred_region
      %s111 = ssub.s32 1024, 1024
      %112 = vsyncadd [#allocation12], %s111
      %s113 = sshll.u32 [#allocation13], 4
      %s114 = int_to_ptr.vmem [resolvable:$true] %s113
      %119 = dma.hbm_to_vmem [thread:$0]  %s9, 1024, %s114, [#allocation12], 64, 64, 4
    $region41: #{tpu_custom_call.1} parent=1 // pred_fallthru
      _
    // Predicated region
    $region42: #{tpu_custom_call.1} parent=1 // pred_check
      _
    $region43: #{tpu_custom_call.1} parent=1 // pred_check_branch
      %121 = sbr.rel (0) target = $region45
    $region44: #{tpu_custom_call.1} parent=1 // pred_region
      %s123 = ssub.s32 16, 16
      %124 = vsyncadd [#allocation15], %s123
      %s126 = sshll.u32 [#allocation14], 4
      %s127 = int_to_ptr.vmem [resolvable:$true] %s126
      %129 = dma.hbm_to_vmem [thread:$0]  %s10, 16, %s127, [#allocation15]
    $region45: #{tpu_custom_call.1} parent=1 // pred_fallthru
      _
    // Predicated region
    $region46: #{tpu_custom_call.1} parent=1 // pred_check
      _
    $region47: #{tpu_custom_call.1} parent=1 // pred_check_branch
      %131 = sbr.rel (0) target = $region49
    $region48: #{tpu_custom_call.1} parent=1 // pred_region
      %s133 = ssub.s32 1024, 1024
      %134 = vsyncadd [#allocation15], %s133
      %s135 = sshll.u32 [#allocation16], 4
      %s136 = int_to_ptr.vmem [resolvable:$true] %s135
      %141 = dma.hbm_to_vmem [thread:$0]  %s11, 1024, %s136, [#allocation15], 64, 64, 4
    $region49: #{tpu_custom_call.1} parent=1 // pred_fallthru
      _
    // Predicated region
    $region50: #{tpu_custom_call.1} parent=1 // pred_check
      _
    $region51: #{tpu_custom_call.1} parent=1 // pred_check_branch
      %143 = sbr.rel (0) target = $region53
    $region52: #{tpu_custom_call.1} parent=1 // pred_region
      %s145 = ssub.s32 16, 16
      %146 = vsyncadd [#allocation18], %s145
      %s148 = sshll.u32 [#allocation17], 4
      %s149 = int_to_ptr.vmem [resolvable:$true] %s148
      %151 = dma.hbm_to_vmem [thread:$0]  %s12, 16, %s149, [#allocation18]
    $region53: #{tpu_custom_call.1} parent=1 // pred_fallthru
      _
    // Predicated region
    $region54: #{tpu_custom_call.1} parent=1 // pred_check
      _
    $region55: #{tpu_custom_call.1} parent=1 // pred_check_branch
      %153 = sbr.rel (0) target = $region57
    $region56: #{tpu_custom_call.1} parent=1 // pred_region
      %s155 = ssub.s32 1024, 1024
      %156 = vsyncadd [#allocation18], %s155
      %s157 = sshll.u32 [#allocation19], 4
      %s158 = int_to_ptr.vmem [resolvable:$true] %s157
      %163 = dma.hbm_to_vmem [thread:$0]  %s13, 1024, %s158, [#allocation18], 64, 64, 4
    $region57: #{tpu_custom_call.1} parent=1 // pred_fallthru
      _
    // Predicated region
    $region58: #{tpu_custom_call.1} parent=1 // pred_check
      _
    $region59: #{tpu_custom_call.1} parent=1 // pred_check_branch
      %165 = sbr.rel (0) target = $region61
    $region60: #{tpu_custom_call.1} parent=1 // pred_region
      %s167 = ssub.s32 16, 16
      %168 = vsyncadd [#allocation21], %s167
      %s170 = sshll.u32 [#allocation20], 4
      %s171 = int_to_ptr.vmem [resolvable:$true] %s170
      %173 = dma.hbm_to_vmem [thread:$0]  %s14, 16, %s171, [#allocation21]
    $region61: #{tpu_custom_call.1} parent=1 // pred_fallthru
      _
    // Predicated region
    $region62: #{tpu_custom_call.1} parent=1 // pred_check
      _
    $region63: #{tpu_custom_call.1} parent=1 // pred_check_branch
      %175 = sbr.rel (0) target = $region65
    $region64: #{tpu_custom_call.1} parent=1 // pred_region
      %s177 = ssub.s32 1024, 1024
      %178 = vsyncadd [#allocation21], %s177
      %s179 = sshll.u32 [#allocation22], 4
      %s180 = int_to_ptr.vmem [resolvable:$true] %s179
      %185 = dma.hbm_to_vmem [thread:$0]  %s15, 1024, %s180, [#allocation21], 64, 64, 4
    $region65: #{tpu_custom_call.1} parent=1 // pred_fallthru
      _
    // Predicated region
    $region66: #{tpu_custom_call.1} parent=1 // pred_check
      _
    $region67: #{tpu_custom_call.1} parent=1 // pred_check_branch
      %187 = sbr.rel (0) target = $region69
    $region68: #{tpu_custom_call.1} parent=1 // pred_region
      %s189 = ssub.s32 16, 16
      %190 = vsyncadd [#allocation24], %s189
      %s192 = sshll.u32 [#allocation23], 4
      %s193 = int_to_ptr.vmem [resolvable:$true] %s192
      %195 = dma.hbm_to_vmem [thread:$0]  %s16, 16, %s193, [#allocation24]
    $region69: #{tpu_custom_call.1} parent=1 // pred_fallthru
      _
    // Predicated region
    $region70: #{tpu_custom_call.1} parent=1 // pred_check
      _
    $region71: #{tpu_custom_call.1} parent=1 // pred_check_branch
      %197 = sbr.rel (0) target = $region73
    $region72: #{tpu_custom_call.1} parent=1 // pred_region
      _
    $region73: #{tpu_custom_call.1} parent=1 // pred_fallthru
      _
    // Predicated region
    $region74: #{tpu_custom_call.1} parent=1 // pred_check
      _
    $region75: #{tpu_custom_call.1} parent=1 // pred_check_branch
      %199 = sbr.rel (0) target = $region77
    $region76: #{tpu_custom_call.1} parent=1 // pred_region
      _
    $region77: #{tpu_custom_call.1} parent=1 // pred_fallthru
      _
    // Predicated region
    $region78: #{tpu_custom_call.1} parent=1 // pred_check
      _
    $region79: #{tpu_custom_call.1} parent=1 // pred_check_branch
      %201 = sbr.rel (0) target = $region81
    $region80: #{tpu_custom_call.1} parent=1 // pred_region
      %s203 = ssub.s32 512, 512
      %204 = vsyncadd [#allocation24], %s203
      %s205 = sshll.u32 [#allocation25], 4
      %s206 = int_to_ptr.vmem [resolvable:$true] %s205
      %211 = dma.hbm_to_vmem [thread:$0]  %s19, 512, %s206, [#allocation24], 64, 64, 4
    $region81: #{tpu_custom_call.1} parent=1 // pred_fallthru
      _
    // Predicated region
    $region82: #{tpu_custom_call.1} parent=1 // pred_check
      _
    $region83: #{tpu_custom_call.1} parent=1 // pred_check_branch
      %213 = sbr.rel (0) target = $region85
    $region84: #{tpu_custom_call.1} parent=1 // pred_region
      _
    $region85: #{tpu_custom_call.1} parent=1 // pred_fallthru
      _
    // Predicated region
    $region86: #{tpu_custom_call.1} parent=1 // pred_check
      _
    $region87: #{tpu_custom_call.1} parent=1 // pred_check_branch
      %215 = sbr.rel (0) target = $region89
    $region88: #{tpu_custom_call.1} parent=1 // pred_region
      _
    $region89: #{tpu_custom_call.1} parent=1 // pred_fallthru
      _
    // Predicated region
    $region90: #{tpu_custom_call.1} parent=1 // pred_check
      _
    $region91: #{tpu_custom_call.1} parent=1 // pred_check_branch
      %217 = sbr.rel (0) target = $region93
    $region92: #{tpu_custom_call.1} parent=1 // pred_region
      _
    $region93: #{tpu_custom_call.1} parent=1 // pred_fallthru
      _
    // Predicated region
    $region94: #{tpu_custom_call.1} parent=1 // pred_check
      _
    $region95: #{tpu_custom_call.1} parent=1 // pred_check_branch
      %219 = sbr.rel (0) target = $region97
    $region96: #{tpu_custom_call.1} parent=1 // pred_region
      _
    $region97: #{tpu_custom_call.1} parent=1 // pred_fallthru
      _
    // Predicated region
    $region98: #{tpu_custom_call.1} parent=1 // pred_check
      _
    $region99: #{tpu_custom_call.1} parent=1 // pred_check_branch
      %221 = sbr.rel (0) target = $region101
    $region100: #{tpu_custom_call.1} parent=1 // pred_region
      _
    $region101: #{tpu_custom_call.1} parent=1 // pred_fallthru
      _
    // Predicated region
    $region102: #{tpu_custom_call.1} parent=1 // pred_check
      _
    $region103: #{tpu_custom_call.1} parent=1 // pred_check_branch
      %223 = sbr.rel (0) target = $region105
    $region104: #{tpu_custom_call.1} parent=1 // pred_region
      %224 = dma.done [#allocation4], 64
    $region105: #{tpu_custom_call.1} parent=1 // pred_fallthru
      _
    // Predicated region
    $region106: #{tpu_custom_call.1} parent=1 // pred_check
      _
    $region107: #{tpu_custom_call.1} parent=1 // pred_check_branch
      %226 = sbr.rel (0) target = $region109
    $region108: #{tpu_custom_call.1} parent=1 // pred_region
      %227 = dma.done [#allocation6], 256
    $region109: #{tpu_custom_call.1} parent=1 // pred_fallthru
      _
    // Predicated region
    $region110: #{tpu_custom_call.1} parent=1 // pred_check
      _
    $region111: #{tpu_custom_call.1} parent=1 // pred_check_branch
      %229 = sbr.rel (0) target = $region113
    $region112: #{tpu_custom_call.1} parent=1 // pred_region
      %230 = dma.done [#allocation6], 16
    $region113: #{tpu_custom_call.1} parent=1 // pred_fallthru
      _
    // Predicated region
    $region114: #{tpu_custom_call.1} parent=1 // pred_check
      _
    $region115: #{tpu_custom_call.1} parent=1 // pred_check_branch
      %232 = sbr.rel (0) target = $region117
    $region116: #{tpu_custom_call.1} parent=1 // pred_region
      %233 = dma.done [#allocation9], 16
    $region117: #{tpu_custom_call.1} parent=1 // pred_fallthru
      _
    // Predicated region
    $region118: #{tpu_custom_call.1} parent=1 // pred_check
      _
    $region119: #{tpu_custom_call.1} parent=1 // pred_check_branch
      %235 = sbr.rel (0) target = $region121
    $region120: #{tpu_custom_call.1} parent=1 // pred_region
      %236 = dma.done [#allocation9], 16
    $region121: #{tpu_custom_call.1} parent=1 // pred_fallthru
      _
    // Predicated region
    $region122: #{tpu_custom_call.1} parent=1 // pred_check
      _
    $region123: #{tpu_custom_call.1} parent=1 // pred_check_branch
      %238 = sbr.rel (0) target = $region125
    $region124: #{tpu_custom_call.1} parent=1 // pred_region
      %239 = dma.done [#allocation12], 16
    $region125: #{tpu_custom_call.1} parent=1 // pred_fallthru
      _
    // Predicated region
    $region126: #{tpu_custom_call.1} parent=1 // pred_check
      _
    $region127: #{tpu_custom_call.1} parent=1 // pred_check_branch
      %241 = sbr.rel (0) target = $region129
    $region128: #{tpu_custom_call.1} parent=1 // pred_region
      %242 = dma.done [#allocation12], 1024
    $region129: #{tpu_custom_call.1} parent=1 // pred_fallthru
      _
    // Predicated region
    $region130: #{tpu_custom_call.1} parent=1 // pred_check
      _
    $region131: #{tpu_custom_call.1} parent=1 // pred_check_branch
      %244 = sbr.rel (0) target = $region133
    $region132: #{tpu_custom_call.1} parent=1 // pred_region
      %245 = dma.done [#allocation15], 16
    $region133: #{tpu_custom_call.1} parent=1 // pred_fallthru
      _
    // Predicated region
    $region134: #{tpu_custom_call.1} parent=1 // pred_check
      _
    $region135: #{tpu_custom_call.1} parent=1 // pred_check_branch
      %247 = sbr.rel (0) target = $region137
    $region136: #{tpu_custom_call.1} parent=1 // pred_region
      %248 = dma.done [#allocation15], 1024
    $region137: #{tpu_custom_call.1} parent=1 // pred_fallthru
      _
    // Predicated region
    $region138: #{tpu_custom_call.1} parent=1 // pred_check
      _
    $region139: #{tpu_custom_call.1} parent=1 // pred_check_branch
      %250 = sbr.rel (0) target = $region141
    $region140: #{tpu_custom_call.1} parent=1 // pred_region
      %251 = dma.done [#allocation18], 16
    $region141: #{tpu_custom_call.1} parent=1 // pred_fallthru
      _
    // Predicated region
    $region142: #{tpu_custom_call.1} parent=1 // pred_check
      _
    $region143: #{tpu_custom_call.1} parent=1 // pred_check_branch
      %253 = sbr.rel (0) target = $region145
    $region144: #{tpu_custom_call.1} parent=1 // pred_region
      %254 = dma.done [#allocation18], 1024
    $region145: #{tpu_custom_call.1} parent=1 // pred_fallthru
      _
    // Predicated region
    $region146: #{tpu_custom_call.1} parent=1 // pred_check
      _
    $region147: #{tpu_custom_call.1} parent=1 // pred_check_branch
      %256 = sbr.rel (0) target = $region149
    $region148: #{tpu_custom_call.1} parent=1 // pred_region
      %257 = dma.done [#allocation21], 16
    $region149: #{tpu_custom_call.1} parent=1 // pred_fallthru
      _
    // Predicated region
    $region150: #{tpu_custom_call.1} parent=1 // pred_check
      _
    $region151: #{tpu_custom_call.1} parent=1 // pred_check_branch
      %259 = sbr.rel (0) target = $region153
    $region152: #{tpu_custom_call.1} parent=1 // pred_region
      %260 = dma.done [#allocation21], 1024
    $region153: #{tpu_custom_call.1} parent=1 // pred_fallthru
      _
    // Predicated region
    $region154: #{tpu_custom_call.1} parent=1 // pred_check
      _
    $region155: #{tpu_custom_call.1} parent=1 // pred_check_branch
      %262 = sbr.rel (0) target = $region157
    $region156: #{tpu_custom_call.1} parent=1 // pred_region
      %263 = dma.done [#allocation24], 16
    $region157: #{tpu_custom_call.1} parent=1 // pred_fallthru
      _
    // Predicated region
    $region158: #{tpu_custom_call.1} parent=1 // pred_check
      _
    $region159: #{tpu_custom_call.1} parent=1 // pred_check_branch
      %265 = sbr.rel (0) target = $region161
    $region160: #{tpu_custom_call.1} parent=1 // pred_region
      %266 = dma.done [#allocation24], 512
    $region161: #{tpu_custom_call.1} parent=1 // pred_fallthru
      _
    %v268 = vld [vmem:[#allocation3] sm:$0xf]
    %v269 = vld [vmem:[#allocation5] sm:$0xf]
    %v270 = vld [vmem:[#allocation5 + $0x4] sm:$0xf]
    %v271 = vld [vmem:[#allocation5 + $0x8] sm:$0xf]
    %v272 = vld [vmem:[#allocation5 + $0xc] sm:$0xf]
    %v273 = vld [vmem:[#allocation7] sm:$0x1]
    %v275 = vlaneseq
    %v276 = vshrl.u32 %v275, 7
    %v277 = vsub.s32 0, %v276
    %v278 = vrot.slane %v273, %v277
    %v284 = vunpack.c.l.b16 %v269
    %v285 = vunpack.c.l.b16 %v270
    %v286 = vunpack.c.l.b16 %v271
    %v287 = vunpack.c.l.b16 %v272
    %v288 = vpack.c.b16 %v285, %v284
    %v289 = vpack.c.b16 %v287, %v286
    %vm292 = vcmask 261120
    %v294 = vsel %vm292, %v268, 0
    %296 = vmatprep.subr.bf16.mxu0 0
    %297 = vmatpush1.bf16.msra.mxu0 %v288
    %298 = vmatprep.subr.bf16.mxu0 0
    %299 = vmatpush1.bf16.msra.mxu0 %v289
    %300 = vmatprep.subr.bf16.mxu0 0
    %301 = vmatpush1.bf16.msra.mxu0 0
    %302 = vmatprep.subr.bf16.mxu0 0
    %303 = vmatpush1.bf16.msra.mxu0 0
    %304 = vmatprep.subr.bf16.mxu0 0
    %305 = vmatpush1.bf16.msra.mxu0 0
    %306 = vmatprep.subr.bf16.mxu0 0
    %307 = vmatpush1.bf16.msra.mxu0 0
    %308 = vmatprep.subr.bf16.mxu0 0
    %309 = vmatpush1.bf16.msra.mxu0 0
    %310 = vmatprep.subr.bf16.mxu0 0
    %311 = vmatpush1.bf16.msra.mxu0 0
    %312 = vmatprep.subr.bf16.mxu0 0
    %313 = vmatpush1.bf16.msra.mxu0 0
    %314 = vmatprep.subr.bf16.mxu0 0
    %315 = vmatpush1.bf16.msra.mxu0 0
    %316 = vmatprep.subr.bf16.mxu0 0
    %317 = vmatpush1.bf16.msra.mxu0 0
    %318 = vmatprep.subr.bf16.mxu0 0
    %319 = vmatpush1.bf16.msra.mxu0 0
    %320 = vmatprep.subr.bf16.mxu0 0
    %321 = vmatpush1.bf16.msra.mxu0 0
    %322 = vmatprep.subr.bf16.mxu0 0
    %323 = vmatpush1.bf16.msra.mxu0 0
    %324 = vmatprep.subr.bf16.mxu0 0
    %325 = vmatpush1.bf16.msra.mxu0 0
    %326 = vmatprep.subr.bf16.mxu0 0
    %327 = vmatpush1.bf16.msra.mxu0 0
    %328 = vmatprep.mubr.bf16.mxu0 0
    %329 = vmatmul.mubr.bf16.gmra.mrb[0].mxu0 %v294
    %v330 = vpop.f32.mrb[0].mxu0
    %v331 = vadd.f32 %v278, %v330
    %v332 = vpop.f32.mrb[0].mxu0
    %v333 = vpop.f32.mrb[0].mxu0
    %v334 = vpop.f32.mrb[0].mxu0
    %335 = vdwg.mxu0
    %vm336 = vcmp.gt.f32.partialorder %v331, 0.0
    %v337 = vmul.f32 %v331, 0.1
    %v338 = vsel %vm336, %v331, %v337
    %v339 = vpack.c.bf16 %v338, %v338
    %v340 = vld [vmem:[%s3] sm:$0xf]
    %v341 = vld [vmem:[%s3 + $0x4] sm:$0xf]
    %v342 = vld [vmem:[%s3 + $0x8] sm:$0xf]
    %v343 = vld [vmem:[%s3 + $0xc] sm:$0xf]
    %v344 = vld [vmem:[%s3 + $0x10] sm:$0xf]
    %v345 = vld [vmem:[%s3 + $0x14] sm:$0xf]
    %v346 = vld [vmem:[%s3 + $0x18] sm:$0xf]
    %v347 = vld [vmem:[%s3 + $0x1c] sm:$0xf]
    %v348 = vld [vmem:[%s3 + $0x20] sm:$0xf]
    %v349 = vld [vmem:[%s3 + $0x24] sm:$0xf]
    %v350 = vld [vmem:[%s3 + $0x28] sm:$0xf]
    %v351 = vld [vmem:[%s3 + $0x2c] sm:$0xf]
    %v352 = vld [vmem:[%s3 + $0x30] sm:$0xf]
    %v353 = vld [vmem:[%s3 + $0x34] sm:$0xf]
    %v354 = vld [vmem:[%s3 + $0x38] sm:$0xf]
    %v355 = vld [vmem:[%s3 + $0x3c] sm:$0xf]
    %v356 = vld [vmem:[#allocation8] sm:$0x1]
    %v358 = vlaneseq
    %v359 = vshrl.u32 %v358, 7
    %v360 = vsub.s32 0, %v359
    %v361 = vrot.slane %v356, %v360
    %v379 = vunpack.c.l.b16 %v340
    %v380 = vunpack.c.l.b16 %v341
    %v381 = vunpack.c.l.b16 %v342
    %v382 = vunpack.c.l.b16 %v343
    %v383 = vunpack.c.l.b16 %v344
    %v384 = vunpack.c.l.b16 %v345
    %v385 = vunpack.c.l.b16 %v346
    %v386 = vunpack.c.l.b16 %v347
    %v387 = vunpack.c.l.b16 %v348
    %v388 = vunpack.c.l.b16 %v349
    %v389 = vunpack.c.l.b16 %v350
    %v390 = vunpack.c.l.b16 %v351
    %v391 = vunpack.c.l.b16 %v352
    %v392 = vunpack.c.l.b16 %v353
    %v393 = vunpack.c.l.b16 %v354
    %v394 = vunpack.c.l.b16 %v355
    %v395 = vpack.c.b16 %v380, %v379
    %v396 = vpack.c.b16 %v382, %v381
    %v397 = vpack.c.b16 %v384, %v383
    %v398 = vpack.c.b16 %v386, %v385
    %v399 = vpack.c.b16 %v388, %v387
    %v400 = vpack.c.b16 %v390, %v389
    %v401 = vpack.c.b16 %v392, %v391
    %v402 = vpack.c.b16 %v394, %v393
    %411 = vmatprep.subr.bf16.mxu0 0
    %412 = vmatpush1.bf16.msra.mxu0 %v395
    %413 = vmatprep.subr.bf16.mxu0 0
    %414 = vmatpush1.bf16.msra.mxu0 %v396
    %415 = vmatprep.subr.bf16.mxu0 0
    %416 = vmatpush1.bf16.msra.mxu0 %v397
    %417 = vmatprep.subr.bf16.mxu0 0
    %418 = vmatpush1.bf16.msra.mxu0 %v398
    %419 = vmatprep.subr.bf16.mxu0 0
    %420 = vmatpush1.bf16.msra.mxu0 %v399
    %421 = vmatprep.subr.bf16.mxu0 0
    %422 = vmatpush1.bf16.msra.mxu0 %v400
    %423 = vmatprep.subr.bf16.mxu0 0
    %424 = vmatpush1.bf16.msra.mxu0 %v401
    %425 = vmatprep.subr.bf16.mxu0 0
    %426 = vmatpush1.bf16.msra.mxu0 %v402
    %427 = vmatprep.subr.bf16.mxu0 0
    %428 = vmatpush1.bf16.msra.mxu0 0
    %429 = vmatprep.subr.bf16.mxu0 0
    %430 = vmatpush1.bf16.msra.mxu0 0
    %431 = vmatprep.subr.bf16.mxu0 0
    %432 = vmatpush1.bf16.msra.mxu0 0
    %433 = vmatprep.subr.bf16.mxu0 0
    %434 = vmatpush1.bf16.msra.mxu0 0
    %435 = vmatprep.subr.bf16.mxu0 0
    %436 = vmatpush1.bf16.msra.mxu0 0
    %437 = vmatprep.subr.bf16.mxu0 0
    %438 = vmatpush1.bf16.msra.mxu0 0
    %439 = vmatprep.subr.bf16.mxu0 0
    %440 = vmatpush1.bf16.msra.mxu0 0
    %441 = vmatprep.subr.bf16.mxu0 0
    %442 = vmatpush1.bf16.msra.mxu0 0
    %443 = vmatprep.mubr.bf16.mxu0 0
    %444 = vmatmul.mubr.bf16.gmra.mrb[0].mxu0 %v339
    %v445 = vpop.f32.mrb[0].mxu0
    %v446 = vadd.f32 %v361, %v445
    %v447 = vpop.f32.mrb[0].mxu0
    %v448 = vpop.f32.mrb[0].mxu0
    %v449 = vpop.f32.mrb[0].mxu0
    %450 = vdwg.mxu0
    %vm451 = vcmp.gt.f32.partialorder %v446, 0.0
    %v452 = vmul.f32 %v446, 0.1
    %v453 = vsel %vm451, %v446, %v452
    %v454 = vpack.c.bf16 %v453, %v453
    %v455 = vld [vmem:[%s5] sm:$0xf]
    %v456 = vld [vmem:[%s5 + $0x4] sm:$0xf]
    %v457 = vld [vmem:[%s5 + $0x8] sm:$0xf]
    %v458 = vld [vmem:[%s5 + $0xc] sm:$0xf]
    %v459 = vld [vmem:[%s5 + $0x10] sm:$0xf]
    %v460 = vld [vmem:[%s5 + $0x14] sm:$0xf]
    %v461 = vld [vmem:[%s5 + $0x18] sm:$0xf]
    %v462 = vld [vmem:[%s5 + $0x1c] sm:$0xf]
    %v463 = vld [vmem:[%s5 + $0x20] sm:$0xf]
    %v464 = vld [vmem:[%s5 + $0x24] sm:$0xf]
    %v465 = vld [vmem:[%s5 + $0x28] sm:$0xf]
    %v466 = vld [vmem:[%s5 + $0x2c] sm:$0xf]
    %v467 = vld [vmem:[%s5 + $0x30] sm:$0xf]
    %v468 = vld [vmem:[%s5 + $0x34] sm:$0xf]
    %v469 = vld [vmem:[%s5 + $0x38] sm:$0xf]
    %v470 = vld [vmem:[%s5 + $0x3c] sm:$0xf]
    %v471 = vld [vmem:[#allocation10] sm:$0x1]
    %v473 = vlaneseq
    %v474 = vshrl.u32 %v473, 7
    %v475 = vsub.s32 0, %v474
    %v476 = vrot.slane %v471, %v475
    %v494 = vunpack.c.l.b16 %v455
    %v495 = vunpack.c.l.b16 %v456
    %v496 = vunpack.c.l.b16 %v457
    %v497 = vunpack.c.l.b16 %v458
    %v498 = vunpack.c.l.b16 %v459
    %v499 = vunpack.c.l.b16 %v460
    %v500 = vunpack.c.l.b16 %v461
    %v501 = vunpack.c.l.b16 %v462
    %v502 = vunpack.c.l.b16 %v463
    %v503 = vunpack.c.l.b16 %v464
    %v504 = vunpack.c.l.b16 %v465
    %v505 = vunpack.c.l.b16 %v466
    %v506 = vunpack.c.l.b16 %v467
    %v507 = vunpack.c.l.b16 %v468
    %v508 = vunpack.c.l.b16 %v469
    %v509 = vunpack.c.l.b16 %v470
    %v510 = vpack.c.b16 %v495, %v494
    %v511 = vpack.c.b16 %v497, %v496
    %v512 = vpack.c.b16 %v499, %v498
    %v513 = vpack.c.b16 %v501, %v500
    %v514 = vpack.c.b16 %v503, %v502
    %v515 = vpack.c.b16 %v505, %v504
    %v516 = vpack.c.b16 %v507, %v506
    %v517 = vpack.c.b16 %v509, %v508
    %526 = vmatprep.subr.bf16.mxu0 0
    %527 = vmatpush1.bf16.msra.mxu0 %v510
    %528 = vmatprep.subr.bf16.mxu0 0
    %529 = vmatpush1.bf16.msra.mxu0 %v511
    %530 = vmatprep.subr.bf16.mxu0 0
    %531 = vmatpush1.bf16.msra.mxu0 %v512
    %532 = vmatprep.subr.bf16.mxu0 0
    %533 = vmatpush1.bf16.msra.mxu0 %v513
    %534 = vmatprep.subr.bf16.mxu0 0
    %535 = vmatpush1.bf16.msra.mxu0 %v514
    %536 = vmatprep.subr.bf16.mxu0 0
    %537 = vmatpush1.bf16.msra.mxu0 %v515
    %538 = vmatprep.subr.bf16.mxu0 0
    %539 = vmatpush1.bf16.msra.mxu0 %v516
    %540 = vmatprep.subr.bf16.mxu0 0
    %541 = vmatpush1.bf16.msra.mxu0 %v517
    %542 = vmatprep.subr.bf16.mxu0 0
    %543 = vmatpush1.bf16.msra.mxu0 0
    %544 = vmatprep.subr.bf16.mxu0 0
    %545 = vmatpush1.bf16.msra.mxu0 0
    %546 = vmatprep.subr.bf16.mxu0 0
    %547 = vmatpush1.bf16.msra.mxu0 0
    %548 = vmatprep.subr.bf16.mxu0 0
    %549 = vmatpush1.bf16.msra.mxu0 0
    %550 = vmatprep.subr.bf16.mxu0 0
    %551 = vmatpush1.bf16.msra.mxu0 0
    %552 = vmatprep.subr.bf16.mxu0 0
    %553 = vmatpush1.bf16.msra.mxu0 0
    %554 = vmatprep.subr.bf16.mxu0 0
    %555 = vmatpush1.bf16.msra.mxu0 0
    %556 = vmatprep.subr.bf16.mxu0 0
    %557 = vmatpush1.bf16.msra.mxu0 0
    %558 = vmatprep.mubr.bf16.mxu0 0
    %559 = vmatmul.mubr.bf16.gmra.mrb[0].mxu0 %v454
    %v560 = vpop.f32.mrb[0].mxu0
    %v561 = vadd.f32 %v476, %v560
    %v562 = vpop.f32.mrb[0].mxu0
    %v563 = vpop.f32.mrb[0].mxu0
    %v564 = vpop.f32.mrb[0].mxu0
    %565 = vdwg.mxu0
    %vm566 = vcmp.gt.f32.partialorder %v561, 0.0
    %v567 = vmul.f32 %v561, 0.1
    %v568 = vsel %vm566, %v561, %v567
    %v569 = vpack.c.bf16 %v568, %v568
    %v570 = vld [vmem:[%s7] sm:$0xf]
    %v571 = vld [vmem:[%s7 + $0x4] sm:$0xf]
    %v572 = vld [vmem:[%s7 + $0x8] sm:$0xf]
    %v573 = vld [vmem:[%s7 + $0xc] sm:$0xf]
    %v574 = vld [vmem:[%s7 + $0x10] sm:$0xf]
    %v575 = vld [vmem:[%s7 + $0x14] sm:$0xf]
    %v576 = vld [vmem:[%s7 + $0x18] sm:$0xf]
    %v577 = vld [vmem:[%s7 + $0x1c] sm:$0xf]
    %v578 = vld [vmem:[%s7 + $0x20] sm:$0xf]
    %v579 = vld [vmem:[%s7 + $0x24] sm:$0xf]
    %v580 = vld [vmem:[%s7 + $0x28] sm:$0xf]
    %v581 = vld [vmem:[%s7 + $0x2c] sm:$0xf]
    %v582 = vld [vmem:[%s7 + $0x30] sm:$0xf]
    %v583 = vld [vmem:[%s7 + $0x34] sm:$0xf]
    %v584 = vld [vmem:[%s7 + $0x38] sm:$0xf]
    %v585 = vld [vmem:[%s7 + $0x3c] sm:$0xf]
    %v586 = vld [vmem:[#allocation11] sm:$0x1]
    %v588 = vlaneseq
    %v589 = vshrl.u32 %v588, 7
    %v590 = vsub.s32 0, %v589
    %v591 = vrot.slane %v586, %v590
    %v609 = vunpack.c.l.b16 %v570
    %v610 = vunpack.c.l.b16 %v571
    %v611 = vunpack.c.l.b16 %v572
    %v612 = vunpack.c.l.b16 %v573
    %v613 = vunpack.c.l.b16 %v574
    %v614 = vunpack.c.l.b16 %v575
    %v615 = vunpack.c.l.b16 %v576
    %v616 = vunpack.c.l.b16 %v577
    %v617 = vunpack.c.l.b16 %v578
    %v618 = vunpack.c.l.b16 %v579
    %v619 = vunpack.c.l.b16 %v580
    %v620 = vunpack.c.l.b16 %v581
    %v621 = vunpack.c.l.b16 %v582
    %v622 = vunpack.c.l.b16 %v583
    %v623 = vunpack.c.l.b16 %v584
    %v624 = vunpack.c.l.b16 %v585
    %v625 = vpack.c.b16 %v610, %v609
    %v626 = vpack.c.b16 %v612, %v611
    %v627 = vpack.c.b16 %v614, %v613
    %v628 = vpack.c.b16 %v616, %v615
    %v629 = vpack.c.b16 %v618, %v617
    %v630 = vpack.c.b16 %v620, %v619
    %v631 = vpack.c.b16 %v622, %v621
    %v632 = vpack.c.b16 %v624, %v623
    %641 = vmatprep.subr.bf16.mxu0 0
    %642 = vmatpush1.bf16.msra.mxu0 %v625
    %643 = vmatprep.subr.bf16.mxu0 0
    %644 = vmatpush1.bf16.msra.mxu0 %v626
    %645 = vmatprep.subr.bf16.mxu0 0
    %646 = vmatpush1.bf16.msra.mxu0 %v627
    %647 = vmatprep.subr.bf16.mxu0 0
    %648 = vmatpush1.bf16.msra.mxu0 %v628
    %649 = vmatprep.subr.bf16.mxu0 0
    %650 = vmatpush1.bf16.msra.mxu0 %v629
    %651 = vmatprep.subr.bf16.mxu0 0
    %652 = vmatpush1.bf16.msra.mxu0 %v630
    %653 = vmatprep.subr.bf16.mxu0 0
    %654 = vmatpush1.bf16.msra.mxu0 %v631
    %655 = vmatprep.subr.bf16.mxu0 0
    %656 = vmatpush1.bf16.msra.mxu0 %v632
    %657 = vmatprep.subr.bf16.mxu0 0
    %658 = vmatpush1.bf16.msra.mxu0 0
    %659 = vmatprep.subr.bf16.mxu0 0
    %660 = vmatpush1.bf16.msra.mxu0 0
    %661 = vmatprep.subr.bf16.mxu0 0
    %662 = vmatpush1.bf16.msra.mxu0 0
    %663 = vmatprep.subr.bf16.mxu0 0
    %664 = vmatpush1.bf16.msra.mxu0 0
    %665 = vmatprep.subr.bf16.mxu0 0
    %666 = vmatpush1.bf16.msra.mxu0 0
    %667 = vmatprep.subr.bf16.mxu0 0
    %668 = vmatpush1.bf16.msra.mxu0 0
    %669 = vmatprep.subr.bf16.mxu0 0
    %670 = vmatpush1.bf16.msra.mxu0 0
    %671 = vmatprep.subr.bf16.mxu0 0
    %672 = vmatpush1.bf16.msra.mxu0 0
    %673 = vmatprep.mubr.bf16.mxu0 0
    %674 = vmatmul.mubr.bf16.gmra.mrb[0].mxu0 %v569
    %v675 = vpop.f32.mrb[0].mxu0
    %v676 = vadd.f32 %v591, %v675
    %v677 = vpop.f32.mrb[0].mxu0
    %v678 = vpop.f32.mrb[0].mxu0
    %v679 = vpop.f32.mrb[0].mxu0
    %680 = vdwg.mxu0
    %vm681 = vcmp.gt.f32.partialorder %v676, 0.0
    %v682 = vmul.f32 %v676, 0.1
    %v683 = vsel %vm681, %v676, %v682
    %v684 = vpack.c.bf16 %v683, %v683
    %v685 = vld [vmem:[#allocation13] sm:$0xf]
    %v686 = vld [vmem:[#allocation13 + $0x4] sm:$0xf]
    %v687 = vld [vmem:[#allocation13 + $0x8] sm:$0xf]
    %v688 = vld [vmem:[#allocation13 + $0xc] sm:$0xf]
    %v689 = vld [vmem:[#allocation13 + $0x10] sm:$0xf]
    %v690 = vld [vmem:[#allocation13 + $0x14] sm:$0xf]
    %v691 = vld [vmem:[#allocation13 + $0x18] sm:$0xf]
    %v692 = vld [vmem:[#allocation13 + $0x1c] sm:$0xf]
    %v693 = vld [vmem:[#allocation13 + $0x20] sm:$0xf]
    %v694 = vld [vmem:[#allocation13 + $0x24] sm:$0xf]
    %v695 = vld [vmem:[#allocation13 + $0x28] sm:$0xf]
    %v696 = vld [vmem:[#allocation13 + $0x2c] sm:$0xf]
    %v697 = vld [vmem:[#allocation13 + $0x30] sm:$0xf]
    %v698 = vld [vmem:[#allocation13 + $0x34] sm:$0xf]
    %v699 = vld [vmem:[#allocation13 + $0x38] sm:$0xf]
    %v700 = vld [vmem:[#allocation13 + $0x3c] sm:$0xf]
    %v701 = vld [vmem:[#allocation14] sm:$0x1]
    %v703 = vlaneseq
    %v704 = vshrl.u32 %v703, 7
    %v705 = vsub.s32 0, %v704
    %v706 = vrot.slane %v701, %v705
    %v724 = vunpack.c.l.b16 %v685
    %v725 = vunpack.c.l.b16 %v686
    %v726 = vunpack.c.l.b16 %v687
    %v727 = vunpack.c.l.b16 %v688
    %v728 = vunpack.c.l.b16 %v689
    %v729 = vunpack.c.l.b16 %v690
    %v730 = vunpack.c.l.b16 %v691
    %v731 = vunpack.c.l.b16 %v692
    %v732 = vunpack.c.l.b16 %v693
    %v733 = vunpack.c.l.b16 %v694
    %v734 = vunpack.c.l.b16 %v695
    %v735 = vunpack.c.l.b16 %v696
    %v736 = vunpack.c.l.b16 %v697
    %v737 = vunpack.c.l.b16 %v698
    %v738 = vunpack.c.l.b16 %v699
    %v739 = vunpack.c.l.b16 %v700
    %v740 = vpack.c.b16 %v725, %v724
    %v741 = vpack.c.b16 %v727, %v726
    %v742 = vpack.c.b16 %v729, %v728
    %v743 = vpack.c.b16 %v731, %v730
    %v744 = vpack.c.b16 %v733, %v732
    %v745 = vpack.c.b16 %v735, %v734
    %v746 = vpack.c.b16 %v737, %v736
    %v747 = vpack.c.b16 %v739, %v738
    %756 = vmatprep.subr.bf16.mxu0 0
    %757 = vmatpush1.bf16.msra.mxu0 %v740
    %758 = vmatprep.subr.bf16.mxu0 0
    %759 = vmatpush1.bf16.msra.mxu0 %v741
    %760 = vmatprep.subr.bf16.mxu0 0
    %761 = vmatpush1.bf16.msra.mxu0 %v742
    %762 = vmatprep.subr.bf16.mxu0 0
    %763 = vmatpush1.bf16.msra.mxu0 %v743
    %764 = vmatprep.subr.bf16.mxu0 0
    %765 = vmatpush1.bf16.msra.mxu0 %v744
    %766 = vmatprep.subr.bf16.mxu0 0
    %767 = vmatpush1.bf16.msra.mxu0 %v745
    %768 = vmatprep.subr.bf16.mxu0 0
    %769 = vmatpush1.bf16.msra.mxu0 %v746
    %770 = vmatprep.subr.bf16.mxu0 0
    %771 = vmatpush1.bf16.msra.mxu0 %v747
    %772 = vmatprep.subr.bf16.mxu0 0
    %773 = vmatpush1.bf16.msra.mxu0 0
    %774 = vmatprep.subr.bf16.mxu0 0
    %775 = vmatpush1.bf16.msra.mxu0 0
    %776 = vmatprep.subr.bf16.mxu0 0
    %777 = vmatpush1.bf16.msra.mxu0 0
    %778 = vmatprep.subr.bf16.mxu0 0
    %779 = vmatpush1.bf16.msra.mxu0 0
    %780 = vmatprep.subr.bf16.mxu0 0
    %781 = vmatpush1.bf16.msra.mxu0 0
    %782 = vmatprep.subr.bf16.mxu0 0
    %783 = vmatpush1.bf16.msra.mxu0 0
    %784 = vmatprep.subr.bf16.mxu0 0
    %785 = vmatpush1.bf16.msra.mxu0 0
    %786 = vmatprep.subr.bf16.mxu0 0
    %787 = vmatpush1.bf16.msra.mxu0 0
    %788 = vmatprep.mubr.bf16.mxu0 0
    %789 = vmatmul.mubr.bf16.gmra.mrb[0].mxu0 %v684
    %v790 = vpop.f32.mrb[0].mxu0
    %v791 = vadd.f32 %v706, %v790
    %v792 = vpop.f32.mrb[0].mxu0
    %v793 = vpop.f32.mrb[0].mxu0
    %v794 = vpop.f32.mrb[0].mxu0
    %795 = vdwg.mxu0
    %v796 = vadd.f32 %v683, %v791
    %v797 = vmax.f32 %v796, 0.0
    %v798 = vpack.c.bf16 %v797, %v797
    %v799 = vld [vmem:[#allocation16] sm:$0xf]
    %v800 = vld [vmem:[#allocation16 + $0x4] sm:$0xf]
    %v801 = vld [vmem:[#allocation16 + $0x8] sm:$0xf]
    %v802 = vld [vmem:[#allocation16 + $0xc] sm:$0xf]
    %v803 = vld [vmem:[#allocation16 + $0x10] sm:$0xf]
    %v804 = vld [vmem:[#allocation16 + $0x14] sm:$0xf]
    %v805 = vld [vmem:[#allocation16 + $0x18] sm:$0xf]
    %v806 = vld [vmem:[#allocation16 + $0x1c] sm:$0xf]
    %v807 = vld [vmem:[#allocation16 + $0x20] sm:$0xf]
    %v808 = vld [vmem:[#allocation16 + $0x24] sm:$0xf]
    %v809 = vld [vmem:[#allocation16 + $0x28] sm:$0xf]
    %v810 = vld [vmem:[#allocation16 + $0x2c] sm:$0xf]
    %v811 = vld [vmem:[#allocation16 + $0x30] sm:$0xf]
    %v812 = vld [vmem:[#allocation16 + $0x34] sm:$0xf]
    %v813 = vld [vmem:[#allocation16 + $0x38] sm:$0xf]
    %v814 = vld [vmem:[#allocation16 + $0x3c] sm:$0xf]
    %v815 = vld [vmem:[#allocation17] sm:$0x1]
    %v817 = vlaneseq
    %v818 = vshrl.u32 %v817, 7
    %v819 = vsub.s32 0, %v818
    %v820 = vrot.slane %v815, %v819
    %v838 = vunpack.c.l.b16 %v799
    %v839 = vunpack.c.l.b16 %v800
    %v840 = vunpack.c.l.b16 %v801
    %v841 = vunpack.c.l.b16 %v802
    %v842 = vunpack.c.l.b16 %v803
    %v843 = vunpack.c.l.b16 %v804
    %v844 = vunpack.c.l.b16 %v805
    %v845 = vunpack.c.l.b16 %v806
    %v846 = vunpack.c.l.b16 %v807
    %v847 = vunpack.c.l.b16 %v808
    %v848 = vunpack.c.l.b16 %v809
    %v849 = vunpack.c.l.b16 %v810
    %v850 = vunpack.c.l.b16 %v811
    %v851 = vunpack.c.l.b16 %v812
    %v852 = vunpack.c.l.b16 %v813
    %v853 = vunpack.c.l.b16 %v814
    %v854 = vpack.c.b16 %v839, %v838
    %v855 = vpack.c.b16 %v841, %v840
    %v856 = vpack.c.b16 %v843, %v842
    %v857 = vpack.c.b16 %v845, %v844
    %v858 = vpack.c.b16 %v847, %v846
    %v859 = vpack.c.b16 %v849, %v848
    %v860 = vpack.c.b16 %v851, %v850
    %v861 = vpack.c.b16 %v853, %v852
    %870 = vmatprep.subr.bf16.mxu0 0
    %871 = vmatpush1.bf16.msra.mxu0 %v854
    %872 = vmatprep.subr.bf16.mxu0 0
    %873 = vmatpush1.bf16.msra.mxu0 %v855
    %874 = vmatprep.subr.bf16.mxu0 0
    %875 = vmatpush1.bf16.msra.mxu0 %v856
    %876 = vmatprep.subr.bf16.mxu0 0
    %877 = vmatpush1.bf16.msra.mxu0 %v857
    %878 = vmatprep.subr.bf16.mxu0 0
    %879 = vmatpush1.bf16.msra.mxu0 %v858
    %880 = vmatprep.subr.bf16.mxu0 0
    %881 = vmatpush1.bf16.msra.mxu0 %v859
    %882 = vmatprep.subr.bf16.mxu0 0
    %883 = vmatpush1.bf16.msra.mxu0 %v860
    %884 = vmatprep.subr.bf16.mxu0 0
    %885 = vmatpush1.bf16.msra.mxu0 %v861
    %886 = vmatprep.subr.bf16.mxu0 0
    %887 = vmatpush1.bf16.msra.mxu0 0
    %888 = vmatprep.subr.bf16.mxu0 0
    %889 = vmatpush1.bf16.msra.mxu0 0
    %890 = vmatprep.subr.bf16.mxu0 0
    %891 = vmatpush1.bf16.msra.mxu0 0
    %892 = vmatprep.subr.bf16.mxu0 0
    %893 = vmatpush1.bf16.msra.mxu0 0
    %894 = vmatprep.subr.bf16.mxu0 0
    %895 = vmatpush1.bf16.msra.mxu0 0
    %896 = vmatprep.subr.bf16.mxu0 0
    %897 = vmatpush1.bf16.msra.mxu0 0
    %898 = vmatprep.subr.bf16.mxu0 0
    %899 = vmatpush1.bf16.msra.mxu0 0
    %900 = vmatprep.subr.bf16.mxu0 0
    %901 = vmatpush1.bf16.msra.mxu0 0
    %902 = vmatprep.mubr.bf16.mxu0 0
    %903 = vmatmul.mubr.bf16.gmra.mrb[0].mxu0 %v798
    %v904 = vpop.f32.mrb[0].mxu0
    %v905 = vadd.f32 %v820, %v904
    %v906 = vpop.f32.mrb[0].mxu0
    %v907 = vpop.f32.mrb[0].mxu0
    %v908 = vpop.f32.mrb[0].mxu0
    %909 = vdwg.mxu0
    %v910 = vadd.f32 %v797, %v905
    %v911 = vmax.f32 %v910, 0.0
    %v912 = vpack.c.bf16 %v911, %v911
    %v913 = vld [vmem:[#allocation19] sm:$0xf]
    %v914 = vld [vmem:[#allocation19 + $0x4] sm:$0xf]
    %v915 = vld [vmem:[#allocation19 + $0x8] sm:$0xf]
    %v916 = vld [vmem:[#allocation19 + $0xc] sm:$0xf]
    %v917 = vld [vmem:[#allocation19 + $0x10] sm:$0xf]
    %v918 = vld [vmem:[#allocation19 + $0x14] sm:$0xf]
    %v919 = vld [vmem:[#allocation19 + $0x18] sm:$0xf]
    %v920 = vld [vmem:[#allocation19 + $0x1c] sm:$0xf]
    %v921 = vld [vmem:[#allocation19 + $0x20] sm:$0xf]
    %v922 = vld [vmem:[#allocation19 + $0x24] sm:$0xf]
    %v923 = vld [vmem:[#allocation19 + $0x28] sm:$0xf]
    %v924 = vld [vmem:[#allocation19 + $0x2c] sm:$0xf]
    %v925 = vld [vmem:[#allocation19 + $0x30] sm:$0xf]
    %v926 = vld [vmem:[#allocation19 + $0x34] sm:$0xf]
    %v927 = vld [vmem:[#allocation19 + $0x38] sm:$0xf]
    %v928 = vld [vmem:[#allocation19 + $0x3c] sm:$0xf]
    %v929 = vld [vmem:[#allocation20] sm:$0x1]
    %v931 = vlaneseq
    %v932 = vshrl.u32 %v931, 7
    %v933 = vsub.s32 0, %v932
    %v934 = vrot.slane %v929, %v933
    %v952 = vunpack.c.l.b16 %v913
    %v953 = vunpack.c.l.b16 %v914
    %v954 = vunpack.c.l.b16 %v915
    %v955 = vunpack.c.l.b16 %v916
    %v956 = vunpack.c.l.b16 %v917
    %v957 = vunpack.c.l.b16 %v918
    %v958 = vunpack.c.l.b16 %v919
    %v959 = vunpack.c.l.b16 %v920
    %v960 = vunpack.c.l.b16 %v921
    %v961 = vunpack.c.l.b16 %v922
    %v962 = vunpack.c.l.b16 %v923
    %v963 = vunpack.c.l.b16 %v924
    %v964 = vunpack.c.l.b16 %v925
    %v965 = vunpack.c.l.b16 %v926
    %v966 = vunpack.c.l.b16 %v927
    %v967 = vunpack.c.l.b16 %v928
    %v968 = vpack.c.b16 %v953, %v952
    %v969 = vpack.c.b16 %v955, %v954
    %v970 = vpack.c.b16 %v957, %v956
    %v971 = vpack.c.b16 %v959, %v958
    %v972 = vpack.c.b16 %v961, %v960
    %v973 = vpack.c.b16 %v963, %v962
    %v974 = vpack.c.b16 %v965, %v964
    %v975 = vpack.c.b16 %v967, %v966
    %984 = vmatprep.subr.bf16.mxu0 0
    %985 = vmatpush1.bf16.msra.mxu0 %v968
    %986 = vmatprep.subr.bf16.mxu0 0
    %987 = vmatpush1.bf16.msra.mxu0 %v969
    %988 = vmatprep.subr.bf16.mxu0 0
    %989 = vmatpush1.bf16.msra.mxu0 %v970
    %990 = vmatprep.subr.bf16.mxu0 0
    %991 = vmatpush1.bf16.msra.mxu0 %v971
    %992 = vmatprep.subr.bf16.mxu0 0
    %993 = vmatpush1.bf16.msra.mxu0 %v972
    %994 = vmatprep.subr.bf16.mxu0 0
    %995 = vmatpush1.bf16.msra.mxu0 %v973
    %996 = vmatprep.subr.bf16.mxu0 0
    %997 = vmatpush1.bf16.msra.mxu0 %v974
    %998 = vmatprep.subr.bf16.mxu0 0
    %999 = vmatpush1.bf16.msra.mxu0 %v975
    %1000 = vmatprep.subr.bf16.mxu0 0
    %1001 = vmatpush1.bf16.msra.mxu0 0
    %1002 = vmatprep.subr.bf16.mxu0 0
    %1003 = vmatpush1.bf16.msra.mxu0 0
    %1004 = vmatprep.subr.bf16.mxu0 0
    %1005 = vmatpush1.bf16.msra.mxu0 0
    %1006 = vmatprep.subr.bf16.mxu0 0
    %1007 = vmatpush1.bf16.msra.mxu0 0
    %1008 = vmatprep.subr.bf16.mxu0 0
    %1009 = vmatpush1.bf16.msra.mxu0 0
    %1010 = vmatprep.subr.bf16.mxu0 0
    %1011 = vmatpush1.bf16.msra.mxu0 0
    %1012 = vmatprep.subr.bf16.mxu0 0
    %1013 = vmatpush1.bf16.msra.mxu0 0
    %1014 = vmatprep.subr.bf16.mxu0 0
    %1015 = vmatpush1.bf16.msra.mxu0 0
    %1016 = vmatprep.mubr.bf16.mxu0 0
    %1017 = vmatmul.mubr.bf16.gmra.mrb[0].mxu0 %v912
    %v1018 = vpop.f32.mrb[0].mxu0
    %v1019 = vadd.f32 %v934, %v1018
    %v1020 = vpop.f32.mrb[0].mxu0
    %v1021 = vpop.f32.mrb[0].mxu0
    %v1022 = vpop.f32.mrb[0].mxu0
    %1023 = vdwg.mxu0
    %v1024 = vadd.f32 %v911, %v1019
    %v1025 = vmax.f32 %v1024, 0.0
    %v1026 = vpack.c.bf16 %v1025, %v1025
    %v1027 = vld [vmem:[#allocation22] sm:$0xf]
    %v1028 = vld [vmem:[#allocation22 + $0x4] sm:$0xf]
    %v1029 = vld [vmem:[#allocation22 + $0x8] sm:$0xf]
    %v1030 = vld [vmem:[#allocation22 + $0xc] sm:$0xf]
    %v1031 = vld [vmem:[#allocation22 + $0x10] sm:$0xf]
    %v1032 = vld [vmem:[#allocation22 + $0x14] sm:$0xf]
    %v1033 = vld [vmem:[#allocation22 + $0x18] sm:$0xf]
    %v1034 = vld [vmem:[#allocation22 + $0x1c] sm:$0xf]
    %v1035 = vld [vmem:[#allocation22 + $0x20] sm:$0xf]
    %v1036 = vld [vmem:[#allocation22 + $0x24] sm:$0xf]
    %v1037 = vld [vmem:[#allocation22 + $0x28] sm:$0xf]
    %v1038 = vld [vmem:[#allocation22 + $0x2c] sm:$0xf]
    %v1039 = vld [vmem:[#allocation22 + $0x30] sm:$0xf]
    %v1040 = vld [vmem:[#allocation22 + $0x34] sm:$0xf]
    %v1041 = vld [vmem:[#allocation22 + $0x38] sm:$0xf]
    %v1042 = vld [vmem:[#allocation22 + $0x3c] sm:$0xf]
    %v1043 = vld [vmem:[#allocation23] sm:$0x1]
    %v1045 = vlaneseq
    %v1046 = vshrl.u32 %v1045, 7
    %v1047 = vsub.s32 0, %v1046
    %v1048 = vrot.slane %v1043, %v1047
    %v1066 = vunpack.c.l.b16 %v1027
    %v1067 = vunpack.c.l.b16 %v1028
    %v1068 = vunpack.c.l.b16 %v1029
    %v1069 = vunpack.c.l.b16 %v1030
    %v1070 = vunpack.c.l.b16 %v1031
    %v1071 = vunpack.c.l.b16 %v1032
    %v1072 = vunpack.c.l.b16 %v1033
    %v1073 = vunpack.c.l.b16 %v1034
    %v1074 = vunpack.c.l.b16 %v1035
    %v1075 = vunpack.c.l.b16 %v1036
    %v1076 = vunpack.c.l.b16 %v1037
    %v1077 = vunpack.c.l.b16 %v1038
    %v1078 = vunpack.c.l.b16 %v1039
    %v1079 = vunpack.c.l.b16 %v1040
    %v1080 = vunpack.c.l.b16 %v1041
    %v1081 = vunpack.c.l.b16 %v1042
    %v1082 = vpack.c.b16 %v1067, %v1066
    %v1083 = vpack.c.b16 %v1069, %v1068
    %v1084 = vpack.c.b16 %v1071, %v1070
    %v1085 = vpack.c.b16 %v1073, %v1072
    %v1086 = vpack.c.b16 %v1075, %v1074
    %v1087 = vpack.c.b16 %v1077, %v1076
    %v1088 = vpack.c.b16 %v1079, %v1078
    %v1089 = vpack.c.b16 %v1081, %v1080
    %1098 = vmatprep.subr.bf16.mxu0 0
    %1099 = vmatpush1.bf16.msra.mxu0 %v1082
    %1100 = vmatprep.subr.bf16.mxu0 0
    %1101 = vmatpush1.bf16.msra.mxu0 %v1083
    %1102 = vmatprep.subr.bf16.mxu0 0
    %1103 = vmatpush1.bf16.msra.mxu0 %v1084
    %1104 = vmatprep.subr.bf16.mxu0 0
    %1105 = vmatpush1.bf16.msra.mxu0 %v1085
    %1106 = vmatprep.subr.bf16.mxu0 0
    %1107 = vmatpush1.bf16.msra.mxu0 %v1086
    %1108 = vmatprep.subr.bf16.mxu0 0
    %1109 = vmatpush1.bf16.msra.mxu0 %v1087
    %1110 = vmatprep.subr.bf16.mxu0 0
    %1111 = vmatpush1.bf16.msra.mxu0 %v1088
    %1112 = vmatprep.subr.bf16.mxu0 0
    %1113 = vmatpush1.bf16.msra.mxu0 %v1089
    %1114 = vmatprep.subr.bf16.mxu0 0
    %1115 = vmatpush1.bf16.msra.mxu0 0
    %1116 = vmatprep.subr.bf16.mxu0 0
    %1117 = vmatpush1.bf16.msra.mxu0 0
    %1118 = vmatprep.subr.bf16.mxu0 0
    %1119 = vmatpush1.bf16.msra.mxu0 0
    %1120 = vmatprep.subr.bf16.mxu0 0
    %1121 = vmatpush1.bf16.msra.mxu0 0
    %1122 = vmatprep.subr.bf16.mxu0 0
    %1123 = vmatpush1.bf16.msra.mxu0 0
    %1124 = vmatprep.subr.bf16.mxu0 0
    %1125 = vmatpush1.bf16.msra.mxu0 0
    %1126 = vmatprep.subr.bf16.mxu0 0
    %1127 = vmatpush1.bf16.msra.mxu0 0
    %1128 = vmatprep.subr.bf16.mxu0 0
    %1129 = vmatpush1.bf16.msra.mxu0 0
    %1130 = vmatprep.mubr.bf16.mxu0 0
    %1131 = vmatmul.mubr.bf16.gmra.mrb[0].mxu0 %v1026
    %v1132 = vpop.f32.mrb[0].mxu0
    %v1133 = vadd.f32 %v1048, %v1132
    %v1134 = vpop.f32.mrb[0].mxu0
    %v1135 = vpop.f32.mrb[0].mxu0
    %v1136 = vpop.f32.mrb[0].mxu0
    %1137 = vdwg.mxu0
    %v1138 = vadd.f32 %v1025, %v1133
    %v1139 = vmax.f32 %v1138, 0.0
    %v1140 = vpack.c.bf16 %v1139, %v1139
    %v1141 = vld [vmem:[%s17] sm:$0xf]
    %v1142 = vld [vmem:[%s17 + $0x4] sm:$0xf]
    %v1143 = vld [vmem:[%s17 + $0x8] sm:$0xf]
    %v1144 = vld [vmem:[%s17 + $0xc] sm:$0xf]
    %v1145 = vld [vmem:[%s17 + $0x10] sm:$0xf]
    %v1146 = vld [vmem:[%s17 + $0x14] sm:$0xf]
    %v1147 = vld [vmem:[%s17 + $0x18] sm:$0xf]
    %v1148 = vld [vmem:[%s17 + $0x1c] sm:$0xf]
    %v1149 = vld [vmem:[%s17 + $0x20] sm:$0xf]
    %v1150 = vld [vmem:[%s17 + $0x24] sm:$0xf]
    %v1151 = vld [vmem:[%s17 + $0x28] sm:$0xf]
    %v1152 = vld [vmem:[%s17 + $0x2c] sm:$0xf]
    %v1153 = vld [vmem:[%s17 + $0x30] sm:$0xf]
    %v1154 = vld [vmem:[%s17 + $0x34] sm:$0xf]
    %v1155 = vld [vmem:[%s17 + $0x38] sm:$0xf]
    %v1156 = vld [vmem:[%s17 + $0x3c] sm:$0xf]
    %v1157 = vld [vmem:[%s18] sm:$0x1]
    %v1159 = vlaneseq
    %v1160 = vshrl.u32 %v1159, 7
    %v1161 = vsub.s32 0, %v1160
    %v1162 = vrot.slane %v1157, %v1161
    %v1180 = vunpack.c.l.b16 %v1141
    %v1181 = vunpack.c.l.b16 %v1142
    %v1182 = vunpack.c.l.b16 %v1143
    %v1183 = vunpack.c.l.b16 %v1144
    %v1184 = vunpack.c.l.b16 %v1145
    %v1185 = vunpack.c.l.b16 %v1146
    %v1186 = vunpack.c.l.b16 %v1147
    %v1187 = vunpack.c.l.b16 %v1148
    %v1188 = vunpack.c.l.b16 %v1149
    %v1189 = vunpack.c.l.b16 %v1150
    %v1190 = vunpack.c.l.b16 %v1151
    %v1191 = vunpack.c.l.b16 %v1152
    %v1192 = vunpack.c.l.b16 %v1153
    %v1193 = vunpack.c.l.b16 %v1154
    %v1194 = vunpack.c.l.b16 %v1155
    %v1195 = vunpack.c.l.b16 %v1156
    %v1196 = vpack.c.b16 %v1181, %v1180
    %v1197 = vpack.c.b16 %v1183, %v1182
    %v1198 = vpack.c.b16 %v1185, %v1184
    %v1199 = vpack.c.b16 %v1187, %v1186
    %v1200 = vpack.c.b16 %v1189, %v1188
    %v1201 = vpack.c.b16 %v1191, %v1190
    %v1202 = vpack.c.b16 %v1193, %v1192
    %v1203 = vpack.c.b16 %v1195, %v1194
    %1212 = vmatprep.subr.bf16.mxu0 0
    %1213 = vmatpush1.bf16.msra.mxu0 %v1196
    %1214 = vmatprep.subr.bf16.mxu0 0
    %1215 = vmatpush1.bf16.msra.mxu0 %v1197
    %1216 = vmatprep.subr.bf16.mxu0 0
    %1217 = vmatpush1.bf16.msra.mxu0 %v1198
    %1218 = vmatprep.subr.bf16.mxu0 0
    %1219 = vmatpush1.bf16.msra.mxu0 %v1199
    %1220 = vmatprep.subr.bf16.mxu0 0
    %1221 = vmatpush1.bf16.msra.mxu0 %v1200
    %1222 = vmatprep.subr.bf16.mxu0 0
    %1223 = vmatpush1.bf16.msra.mxu0 %v1201
    %1224 = vmatprep.subr.bf16.mxu0 0
    %1225 = vmatpush1.bf16.msra.mxu0 %v1202
    %1226 = vmatprep.subr.bf16.mxu0 0
    %1227 = vmatpush1.bf16.msra.mxu0 %v1203
    %1228 = vmatprep.subr.bf16.mxu0 0
    %1229 = vmatpush1.bf16.msra.mxu0 0
    %1230 = vmatprep.subr.bf16.mxu0 0
    %1231 = vmatpush1.bf16.msra.mxu0 0
    %1232 = vmatprep.subr.bf16.mxu0 0
    %1233 = vmatpush1.bf16.msra.mxu0 0
    %1234 = vmatprep.subr.bf16.mxu0 0
    %1235 = vmatpush1.bf16.msra.mxu0 0
    %1236 = vmatprep.subr.bf16.mxu0 0
    %1237 = vmatpush1.bf16.msra.mxu0 0
    %1238 = vmatprep.subr.bf16.mxu0 0
    %1239 = vmatpush1.bf16.msra.mxu0 0
    %1240 = vmatprep.subr.bf16.mxu0 0
    %1241 = vmatpush1.bf16.msra.mxu0 0
    %1242 = vmatprep.subr.bf16.mxu0 0
    %1243 = vmatpush1.bf16.msra.mxu0 0
    %1244 = vmatprep.mubr.bf16.mxu0 0
    %1245 = vmatmul.mubr.bf16.gmra.mrb[0].mxu0 %v1140
    %v1246 = vpop.f32.mrb[0].mxu0
    %v1247 = vadd.f32 %v1162, %v1246
    %v1248 = vpop.f32.mrb[0].mxu0
    %v1249 = vpop.f32.mrb[0].mxu0
    %v1250 = vpop.f32.mrb[0].mxu0
    %1251 = vdwg.mxu0
    %v1252 = vmax.f32 %v1247, 0.0
    %v1253 = vpack.c.bf16 %v1252, %v1252
    %v1254 = vld [vmem:[#allocation25] sm:$0xf]
    %v1255 = vld [vmem:[#allocation25 + $0x4] sm:$0xf]
    %v1256 = vld [vmem:[#allocation25 + $0x8] sm:$0xf]
    %v1257 = vld [vmem:[#allocation25 + $0xc] sm:$0xf]
    %v1258 = vld [vmem:[#allocation25 + $0x10] sm:$0xf]
    %v1259 = vld [vmem:[#allocation25 + $0x14] sm:$0xf]
    %v1260 = vld [vmem:[#allocation25 + $0x18] sm:$0xf]
    %v1261 = vld [vmem:[#allocation25 + $0x1c] sm:$0xf]
    %v1262 = vld [vmem:[%s20] sm:$0x1]
    %v1264 = vlaneseq
    %v1265 = vshrl.u32 %v1264, 7
    %v1266 = vsub.s32 0, %v1265
    %v1267 = vrot.slane %v1262, %v1266
    %v1277 = vunpack.c.l.b16 %v1254
    %v1278 = vunpack.c.l.b16 %v1255
    %v1279 = vunpack.c.l.b16 %v1256
    %v1280 = vunpack.c.l.b16 %v1257
    %v1281 = vunpack.c.l.b16 %v1258
    %v1282 = vunpack.c.l.b16 %v1259
    %v1283 = vunpack.c.l.b16 %v1260
    %v1284 = vunpack.c.l.b16 %v1261
    %v1285 = vpack.c.b16 %v1278, %v1277
    %v1286 = vpack.c.b16 %v1280, %v1279
    %v1287 = vpack.c.b16 %v1282, %v1281
    %v1288 = vpack.c.b16 %v1284, %v1283
    %vm1293 = vcmask 523264
    %v1295 = vsel %vm1293, %v1253, 0
    %1297 = vmatprep.subr.bf16.mxu0 0
    %1298 = vmatpush1.bf16.msra.mxu0 %v1285
    %1299 = vmatprep.subr.bf16.mxu0 0
    %1300 = vmatpush1.bf16.msra.mxu0 %v1286
    %1301 = vmatprep.subr.bf16.mxu0 0
    %1302 = vmatpush1.bf16.msra.mxu0 %v1287
    %1303 = vmatprep.subr.bf16.mxu0 0
    %1304 = vmatpush1.bf16.msra.mxu0 %v1288
    %1305 = vmatprep.subr.bf16.mxu0 0
    %1306 = vmatpush1.bf16.msra.mxu0 0
    %1307 = vmatprep.subr.bf16.mxu0 0
    %1308 = vmatpush1.bf16.msra.mxu0 0
    %1309 = vmatprep.subr.bf16.mxu0 0
    %1310 = vmatpush1.bf16.msra.mxu0 0
    %1311 = vmatprep.subr.bf16.mxu0 0
    %1312 = vmatpush1.bf16.msra.mxu0 0
    %1313 = vmatprep.subr.bf16.mxu0 0
    %1314 = vmatpush1.bf16.msra.mxu0 0
    %1315 = vmatprep.subr.bf16.mxu0 0
    %1316 = vmatpush1.bf16.msra.mxu0 0
    %1317 = vmatprep.subr.bf16.mxu0 0
    %1318 = vmatpush1.bf16.msra.mxu0 0
    %1319 = vmatprep.subr.bf16.mxu0 0
    %1320 = vmatpush1.bf16.msra.mxu0 0
    %1321 = vmatprep.subr.bf16.mxu0 0
    %1322 = vmatpush1.bf16.msra.mxu0 0
    %1323 = vmatprep.subr.bf16.mxu0 0
    %1324 = vmatpush1.bf16.msra.mxu0 0
    %1325 = vmatprep.subr.bf16.mxu0 0
    %1326 = vmatpush1.bf16.msra.mxu0 0
    %1327 = vmatprep.subr.bf16.mxu0 0
    %1328 = vmatpush1.bf16.msra.mxu0 0
    %1329 = vmatprep.mubr.bf16.mxu0 0
    %1330 = vmatmul.mubr.bf16.gmra.mrb[0].mxu0 %v1295
    %v1331 = vpop.f32.mrb[0].mxu0
    %v1332 = vadd.f32 %v1267, %v1331
    %v1333 = vpop.f32.mrb[0].mxu0
    %v1334 = vpop.f32.mrb[0].mxu0
    %v1335 = vpop.f32.mrb[0].mxu0
    %1336 = vdwg.mxu0
    %v1337 = vsub.f32 0.0, %v1332
    %v1338 = vmul.f32 %v1337, 1.442695
    %v1339 = vpow.pop %v1338
    %v1340 = vadd.f32 %v1339, 1.0
    %v1341 = vrcp.pop %v1340
    %v1342 = vmul.f32 %v1139, %v1341
    %v1343 = vpack.c.bf16 %v1342, %v1342
    %v1344 = vld [vmem:[%s21] sm:$0xf]
    %v1345 = vld [vmem:[%s21 + $0x4] sm:$0xf]
    %v1346 = vld [vmem:[%s21 + $0x8] sm:$0xf]
    %v1347 = vld [vmem:[%s21 + $0xc] sm:$0xf]
    %v1348 = vld [vmem:[%s21 + $0x10] sm:$0xf]
    %v1349 = vld [vmem:[%s21 + $0x14] sm:$0xf]
    %v1350 = vld [vmem:[%s21 + $0x18] sm:$0xf]
    %v1351 = vld [vmem:[%s21 + $0x1c] sm:$0xf]
    %v1352 = vld [vmem:[%s21 + $0x20] sm:$0xf]
    %v1353 = vld [vmem:[%s21 + $0x24] sm:$0xf]
    %v1354 = vld [vmem:[%s21 + $0x28] sm:$0xf]
    %v1355 = vld [vmem:[%s21 + $0x2c] sm:$0xf]
    %v1356 = vld [vmem:[%s21 + $0x30] sm:$0xf]
    %v1357 = vld [vmem:[%s21 + $0x34] sm:$0xf]
    %v1358 = vld [vmem:[%s21 + $0x38] sm:$0xf]
    %v1359 = vld [vmem:[%s21 + $0x3c] sm:$0xf]
    %v1360 = vld [vmem:[%s22] sm:$0x1]
    %v1362 = vlaneseq
    %v1363 = vshrl.u32 %v1362, 7
    %v1364 = vsub.s32 0, %v1363
    %v1365 = vrot.slane %v1360, %v1364
    %v1383 = vunpack.c.l.b16 %v1344
    %v1384 = vunpack.c.l.b16 %v1345
    %v1385 = vunpack.c.l.b16 %v1346
    %v1386 = vunpack.c.l.b16 %v1347
    %v1387 = vunpack.c.l.b16 %v1348
    %v1388 = vunpack.c.l.b16 %v1349
    %v1389 = vunpack.c.l.b16 %v1350
    %v1390 = vunpack.c.l.b16 %v1351
    %v1391 = vunpack.c.l.b16 %v1352
    %v1392 = vunpack.c.l.b16 %v1353
    %v1393 = vunpack.c.l.b16 %v1354
    %v1394 = vunpack.c.l.b16 %v1355
    %v1395 = vunpack.c.l.b16 %v1356
    %v1396 = vunpack.c.l.b16 %v1357
    %v1397 = vunpack.c.l.b16 %v1358
    %v1398 = vunpack.c.l.b16 %v1359
    %v1399 = vpack.c.b16 %v1384, %v1383
    %v1400 = vpack.c.b16 %v1386, %v1385
    %v1401 = vpack.c.b16 %v1388, %v1387
    %v1402 = vpack.c.b16 %v1390, %v1389
    %v1403 = vpack.c.b16 %v1392, %v1391
    %v1404 = vpack.c.b16 %v1394, %v1393
    %v1405 = vpack.c.b16 %v1396, %v1395
    %v1406 = vpack.c.b16 %v1398, %v1397
    %1415 = vmatprep.subr.bf16.mxu0 0
    %1416 = vmatpush1.bf16.msra.mxu0 %v1399
    %1417 = vmatprep.subr.bf16.mxu0 0
    %1418 = vmatpush1.bf16.msra.mxu0 %v1400
    %1419 = vmatprep.subr.bf16.mxu0 0
    %1420 = vmatpush1.bf16.msra.mxu0 %v1401
    %1421 = vmatprep.subr.bf16.mxu0 0
    %1422 = vmatpush1.bf16.msra.mxu0 %v1402
    %1423 = vmatprep.subr.bf16.mxu0 0
    %1424 = vmatpush1.bf16.msra.mxu0 %v1403
    %1425 = vmatprep.subr.bf16.mxu0 0
    %1426 = vmatpush1.bf16.msra.mxu0 %v1404
    %1427 = vmatprep.subr.bf16.mxu0 0
    %1428 = vmatpush1.bf16.msra.mxu0 %v1405
    %1429 = vmatprep.subr.bf16.mxu0 0
    %1430 = vmatpush1.bf16.msra.mxu0 %v1406
    %1431 = vmatprep.subr.bf16.mxu0 0
    %1432 = vmatpush1.bf16.msra.mxu0 0
    %1433 = vmatprep.subr.bf16.mxu0 0
    %1434 = vmatpush1.bf16.msra.mxu0 0
    %1435 = vmatprep.subr.bf16.mxu0 0
    %1436 = vmatpush1.bf16.msra.mxu0 0
    %1437 = vmatprep.subr.bf16.mxu0 0
    %1438 = vmatpush1.bf16.msra.mxu0 0
    %1439 = vmatprep.subr.bf16.mxu0 0
    %1440 = vmatpush1.bf16.msra.mxu0 0
    %1441 = vmatprep.subr.bf16.mxu0 0
    %1442 = vmatpush1.bf16.msra.mxu0 0
    %1443 = vmatprep.subr.bf16.mxu0 0
    %1444 = vmatpush1.bf16.msra.mxu0 0
    %1445 = vmatprep.subr.bf16.mxu0 0
    %1446 = vmatpush1.bf16.msra.mxu0 0
    %1447 = vmatprep.mubr.bf16.mxu0 0
    %1448 = vmatmul.mubr.bf16.gmra.mrb[0].mxu0 %v1343
    %v1449 = vpop.f32.mrb[0].mxu0
    %v1450 = vadd.f32 %v1365, %v1449
    %v1451 = vpop.f32.mrb[0].mxu0
    %v1452 = vpop.f32.mrb[0].mxu0
    %v1453 = vpop.f32.mrb[0].mxu0
    %1454 = vdwg.mxu0
    %v1455 = vmax.f32 %v1450, 0.0
    %v1456 = vld [vmem:[%s23] sm:$0x1]
    %v1458 = vlaneseq
    %v1459 = vshrl.u32 %v1458, 7
    %v1460 = vsub.s32 0, %v1459
    %v1461 = vrot.slane %v1456, %v1460
    %v1463 = vmul.f32 %v1455, %v1461
    %v1464 = vsel %vm1293, %v1463, 0.0
    %1465 = vadd.xlane.f32.xlu0 %v1464
    %v1466 = vpop.xlane.xlu0 %1465
    %v1467 = vld [vmem:[#allocation2] sm:$0x1]
    %v1469 = vlaneseq
    %v1470 = vshrl.u32 %v1469, 7
    %v1471 = vsub.s32 0, %v1470
    %v1472 = vrot.slane %v1467, %v1471
    %v1474 = vadd.f32 %v1466, %v1472
    %vm1475 = vcmask 7168
    %1476 = vst.msk [vmem:[%s25] sm:$0xff] %vm1475, %v1474
    // Predicated region
    $region162: #{tpu_custom_call.1} parent=1 // pred_check
      _
    $region163: #{tpu_custom_call.1} parent=1 // pred_check_branch
      %1478 = sbr.rel (0) target = $region165
    $region164: #{tpu_custom_call.1} parent=1 // pred_region
      _
    $region165: #{tpu_custom_call.1} parent=1 // pred_fallthru
      _
    // Predicated region
    $region166: #{tpu_custom_call.1} parent=1 // pred_check
      _
    $region167: #{tpu_custom_call.1} parent=1 // pred_check_branch
      %1480 = sbr.rel (0) target = $region169
    $region168: #{tpu_custom_call.1} parent=1 // pred_region
      _
    $region169: #{tpu_custom_call.1} parent=1 // pred_fallthru
      _
    %1481 = vsyncpa [#allocation4], 1
    %1482 = vsyncpa [#allocation6], 1
    %1483 = vsyncpa [#allocation9], 1
    %1484 = vsyncpa [#allocation12], 1
    %1485 = vsyncpa [#allocation15], 1
    %1486 = vsyncpa [#allocation18], 1
    %1487 = vsyncpa [#allocation21], 1
    %1488 = vsyncpa [#allocation24], 1

</llo_original>
